<compile_context>
chip_gen: v7x
topology: tpu7x:2x2x1
jax: 0.10.0
libtpu: 0.0.40
codegen_flags: <defaults>
</compile_context>

<pallas_src>
import numpy as np
import jax
import jax.numpy as jnp
from jax.experimental import pallas as pl
from jax.experimental.pallas import tpu as pltpu


# Synthetic irreps for the InnerProduct module: "8x0e + 8x1o + 8x2e"
# (list of (multiplicity, l)).  D_in = 8*1 + 8*3 + 8*5 = 72, D_out = 24.
IRREPS_IN = ((8, 0), (8, 1), (8, 2))


def _selection_and_scale(irreps):
    """0/1 selection matrix W[d_in, d_out] and per-lane scale s[d_in] such that
    out = (f1 * f2 * s) @ W reproduces the e3nn 'uuu' inner-product TP with
    path_weight = 1/ir.dim (per-multiplicity mean)."""
    d_in = sum(mul * (2 * l + 1) for mul, l in irreps)
    d_out = sum(mul for mul, _ in irreps)
    w = np.zeros((d_in, d_out), np.float32)
    s = np.zeros((d_in,), np.float32)
    off_i, off_o = 0, 0
    for mul, l in irreps:
        dim = 2 * l + 1
        for u in range(mul):
            w[off_i + u * dim: off_i + (u + 1) * dim, off_o + u] = 1.0
        s[off_i: off_i + mul * dim] = 1.0 / dim
        off_i += mul * dim
        off_o += mul
    return w, s


def _folded_selection_and_scale(irreps, fold):
    """Block-diagonal W (fold copies) + tiled scale, matching a row-major fold
    of `fold` consecutive rows into the lane axis."""
    w, s = _selection_and_scale(irreps)
    wf = np.kron(np.eye(fold, dtype=np.float32), w)
    sf = np.tile(s, fold)
    return wf, sf


def _inner_product_kernel(f1_ref, f2_ref, scale_ref, w_ref, o_ref):
    # Elementwise product + 1/dim scale on the VPU in f32; segmented sum as a
    # single matmul with the resident 0/1 selection matrix on the MXU.
    prod = (f1_ref[...].astype(jnp.float32)
            * f2_ref[...].astype(jnp.float32)
            * scale_ref[...])
    o_ref[...] = jnp.dot(
        prod.astype(w_ref.dtype), w_ref[...],
        preferred_element_type=jnp.float32,
    ).astype(o_ref.dtype)


def _launch(f1, f2, scale, w, tile, core_parallel, vmem_limit_bytes):
    rows, k = f1.shape
    kout = w.shape[1]
    grid = (pl.cdiv(rows, tile),)

    # Executed arithmetic (the MXU really performs the kron-inflated matmul);
    # bytes_accessed is the real HBM traffic.
    flops = 2 * rows * k * kout + 2 * rows * k
    bytes_accessed = (rows * (2 * k + kout) * f1.dtype.itemsize
                      + k * kout * w.dtype.itemsize + k * 4)
    cost = pl.CostEstimate(flops=flops, transcendentals=0,
                           bytes_accessed=bytes_accessed)

    sem = (pltpu.CORE_PARALLEL,) if core_parallel else ("parallel",)

    return pl.pallas_call(
        _inner_product_kernel,
        out_shape=jax.ShapeDtypeStruct((rows, kout), f1.dtype),
        grid_spec=pltpu.PrefetchScalarGridSpec(
            num_scalar_prefetch=0,
            grid=grid,
            in_specs=[
                pl.BlockSpec((tile, k), lambda i: (i, 0)),
                pl.BlockSpec((tile, k), lambda i: (i, 0)),
                # scale: tiny, constant block index -> resident.
                pl.BlockSpec((1, k), lambda i: (0, 0)),
                # W: constant block index -> DMA'd once, kept resident.
                pl.BlockSpec((k, kout), lambda i: (0, 0)),
            ],
            out_specs=pl.BlockSpec((tile, kout), lambda i: (i, 0)),
        ),
        compiler_params=pltpu.CompilerParams(
            dimension_semantics=sem,
            vmem_limit_bytes=vmem_limit_bytes,
        ),
        cost_estimate=cost,
    )(f1, f2, scale, w)


def inner_product(f1, f2, irreps=IRREPS_IN, *, fold=16, tile_rows_folded=1024,
                  tile_rows_flat=8192, dot_dtype=jnp.float32,
                  core_parallel=False, vmem_limit_bytes=48 << 20):
    """Forward of InnerProduct.  f1, f2: (n, d_in) -> (n, d_out).

    Fast path (n % fold == 0): fold `fold` rows into lanes (free reshape under
    jit) for lane-dense tiles.  Ragged / tiny n: run the same kernel directly
    on the original (n, d_in) layout — no padding copies.
    """
    n, d_in = f1.shape
    d_out = sum(mul for mul, _ in irreps)

    if n >= fold and n % fold == 0:
        nf = n // fold
        d_in_f = d_in * fold      # 1152 = 9 * 128  (lane dense)
        d_out_f = d_out * fold    # 384  = 3 * 128  (unmasked stores)
        f1f = f1.reshape(nf, d_in_f)     # row-major regroup: free under jit
        f2f = f2.reshape(nf, d_in_f)
        wf, sf = _folded_selection_and_scale(irreps, fold)
        w = jnp.asarray(wf, dtype=dot_dtype)
        scale = jnp.asarray(sf, dtype=jnp.float32).reshape(1, d_in_f)

        tile = min(tile_rows_folded, nf)
        if tile != nf and tile % 8 != 0:
            tile = max(8, (tile // 8) * 8)

        out_f = _launch(f1f, f2f, scale, w, tile, core_parallel,
                        vmem_limit_bytes)
        return out_f.reshape(n, d_out)

    # Ragged / small-n fallback: same kernel, original layout, zero copies.
    wb, sb = _selection_and_scale(irreps)
    w = jnp.asarray(wb, dtype=dot_dtype)
    scale = jnp.asarray(sb, dtype=jnp.float32).reshape(1, d_in)

    tile = min(tile_rows_flat, n)
    if tile != n and tile % 8 != 0:
        tile = max(8, (tile // 8) * 8)

    return _launch(f1, f2, scale, w, tile, core_parallel, vmem_limit_bytes)


def inner_product_ref(f1, f2, irreps=IRREPS_IN):
    """Pure-JAX reference of the e3nn InnerProduct forward."""
    outs = []
    off = 0
    n = f1.shape[0]
    for mul, l in irreps:
        dim = 2 * l + 1
        b1 = f1[:, off: off + mul * dim].reshape(n, mul, dim)
        b2 = f2[:, off: off + mul * dim].reshape(n, mul, dim)
        outs.append(jnp.mean(b1 * b2, axis=-1))
        off += mul * dim
    return jnp.concatenate(outs, axis=-1)


if __name__ == "__main__":
    key = jax.random.PRNGKey(0)
    k1, k2, k3, k4 = jax.random.split(key, 4)
    d_in = sum(mul * (2 * l + 1) for mul, l in IRREPS_IN)  # 72

    ip = jax.jit(inner_product)

    # Folded fast path: n is a multiple of fold=16.
    n = 32
    f1 = jax.random.normal(k1, (n, d_in), dtype=jnp.float32)
    f2 = jax.random.normal(k2, (n, d_in), dtype=jnp.float32)
    out = jax.block_until_ready(ip(f1, f2))
    ref = inner_product_ref(f1, f2)
    assert out.shape == ref.shape, (out.shape, ref.shape)
    assert jnp.allclose(out, ref, atol=1e-5, rtol=1e-5), \
        float(jnp.max(jnp.abs(out - ref)))

    # Ragged fallback path (n % 16 != 0): no padding copies, same kernel.
    n2 = 21
    g1 = jax.random.normal(k3, (n2, d_in), dtype=jnp.float32)
    g2 = jax.random.normal(k4, (n2, d_in), dtype=jnp.float32)
    out2 = jax.block_until_ready(jax.jit(inner_product)(g1, g2))
    ref2 = inner_product_ref(g1, g2)
    assert out2.shape == ref2.shape, (out2.shape, ref2.shape)
    assert jnp.allclose(out2, ref2, atol=1e-5, rtol=1e-5), \
        float(jnp.max(jnp.abs(out2 - ref2)))

    print("KERNEL_OK")
</pallas_src>

<mosaic_0001>
module attributes {stable_mosaic.version = 11 : i64} {
  func.func @_inner_product_kernel(%arg0: i32, %arg1: memref<2x1152xf32, #tpu.memory_space<vmem>>, %arg2: memref<2x1152xf32, #tpu.memory_space<vmem>>, %arg3: memref<1x1152xf32, #tpu.memory_space<vmem>>, %arg4: memref<1152x384xf32, #tpu.memory_space<vmem>>, %arg5: memref<2x384xf32, #tpu.memory_space<vmem>>) attributes {dimension_semantics = [#tpu.dimension_semantics<parallel>], iteration_bounds = array<i64: 1>, scalar_prefetch = 0 : i64, scratch_operands = 0 : i64, tpu.core_type = #tpu.core_type<tc>, window_params = [{transform_indices = @transform_0, window_bounds = array<i64: 2, 1152>}, {transform_indices = @transform_1, window_bounds = array<i64: 2, 1152>}, {pipeline_mode = #tpu.pipeline_mode<synchronous>, transform_indices = @transform_2, window_bounds = array<i64: 1, 1152>}, {pipeline_mode = #tpu.pipeline_mode<synchronous>, transform_indices = @transform_3, window_bounds = array<i64: 1152, 384>}, {transform_indices = @transform_4, window_bounds = array<i64: 2, 384>}]} {
    %c0 = arith.constant 0 : index
    %c0_0 = arith.constant 0 : index
    %0 = vector.load %arg1[%c0, %c0_0] : memref<2x1152xf32, #tpu.memory_space<vmem>>, vector<2x1152xf32>
    %c0_1 = arith.constant 0 : index
    %c0_2 = arith.constant 0 : index
    %1 = vector.load %arg2[%c0_1, %c0_2] : memref<2x1152xf32, #tpu.memory_space<vmem>>, vector<2x1152xf32>
    %2 = arith.mulf %0, %1 : vector<2x1152xf32>
    %c0_3 = arith.constant 0 : index
    %c0_4 = arith.constant 0 : index
    %3 = vector.load %arg3[%c0_3, %c0_4] : memref<1x1152xf32, #tpu.memory_space<vmem>>, vector<1x1152xf32>
    %4 = vector.broadcast %3 : vector<1x1152xf32> to vector<2x1152xf32>
    %5 = arith.mulf %2, %4 : vector<2x1152xf32>
    %c0_5 = arith.constant 0 : index
    %c0_6 = arith.constant 0 : index
    %6 = vector.load %arg4[%c0_5, %c0_6] : memref<1152x384xf32, #tpu.memory_space<vmem>>, vector<1152x384xf32>
    %cst = arith.constant dense<0.000000e+00> : vector<2x384xf32>
    %7 = tpu.matmul %5, %6, %cst {dimension_numbers = #tpu.dot_dimension_numbers<[1], [0], [0], [1], [0, 0, 1, 1], [], []>} : vector<2x1152xf32>, vector<1152x384xf32>, vector<2x384xf32> -> vector<2x384xf32>
    %c0_7 = arith.constant 0 : index
    %c0_8 = arith.constant 0 : index
    %8 = vector.load %arg5[%c0_7, %c0_8] : memref<2x384xf32, #tpu.memory_space<vmem>>, vector<2x384xf32>
    tpu.vector_store %arg5[%c0_7, %c0_8], %7 {strides = array<i32>} : memref<2x384xf32, #tpu.memory_space<vmem>>, vector<2x384xf32>,
    return
  }
  func.func @transform_0(%arg0: i32) -> (i32, i32) {
    %c0_i32 = arith.constant 0 : i32
    %c0_i32_0 = arith.constant 0 : i32
    return %arg0, %c0_i32 : i32, i32
  }
  func.func @transform_1(%arg0: i32) -> (i32, i32) {
    %c0_i32 = arith.constant 0 : i32
    %c0_i32_0 = arith.constant 0 : i32
    return %arg0, %c0_i32 : i32, i32
  }
  func.func @transform_2(%arg0: i32) -> (i32, i32) {
    %c0_i32 = arith.constant 0 : i32
    %c0_i32_0 = arith.constant 0 : i32
    %c0_i32_1 = arith.constant 0 : i32
    return %c0_i32, %c0_i32_0 : i32, i32
  }
  func.func @transform_3(%arg0: i32) -> (i32, i32) {
    %c0_i32 = arith.constant 0 : i32
    %c0_i32_0 = arith.constant 0 : i32
    %c0_i32_1 = arith.constant 0 : i32
    return %c0_i32, %c0_i32_0 : i32, i32
  }
  func.func @transform_4(%arg0: i32) -> (i32, i32) {
    %c0_i32 = arith.constant 0 : i32
    %c0_i32_0 = arith.constant 0 : i32
    return %arg0, %c0_i32 : i32, i32
  }
}

</mosaic_0001>

<llo_original>
// kernel: inner_product.1
$region0: #{inner_product.1}
  #allocation0 [shape = 'u32[]', space=smem, size = 0x4, offset = 0x4, fixed_abs, tag = 'smem constant byte address 0x4 - core index']
  #allocation1 [shape = 'u32[144,128]{1,0:T(1,128)}', space=vmem, size = 0x12000, scoped, tag = 'internal scratch']
  %s0 = inlined_call_operand.vmem [shape: f32[2,1152], index: 0, kind: input, shape index: {}]
  %s1 = inlined_call_operand.vmem [shape: f32[2,1152], index: 1, kind: input, shape index: {}]
  %s2 = inlined_call_operand.hbm [shape: f32[1,1152], index: 2, kind: input, shape index: {}]
  %s3 = inlined_call_operand.hbm [shape: f32[1152,384], index: 3, kind: input, shape index: {}]
  %s4 = inlined_call_operand.vmem [shape: f32[2,384], index: 4, kind: output, shape index: {}]
  %s5 = sld [smem:[#allocation0]]
  $region34: #{inner_product.1} parent=0
    _
  %s7 = ssub.s32 1, %s5
  %s8 = scalar_select 0, %s7, %s5
  $region1: #{inner_product.1} parent=0
    #allocation2 [shape = 'u8[4608]{0}', space=vmem, size = 0x1400, scoped, tag = 'input window, operand 2, single buffered']
    #allocation3 [shape = 's32[1]{0}', space=sflag, size = 0x4, scoped, tag = 'scoped memory for inner_product.1']
    #allocation4 [shape = 'u8[1769472]{0}', space=vmem, size = 0x1b0000, scoped, tag = 'input window, operand 3, single buffered']
    #allocation5 [shape = 's32[1]{0}', space=sflag, size = 0x4, scoped, tag = 'scoped memory for inner_product.1']
    %9 = vsyncpa [#allocation3], 0
    %10 = vsyncpa [#allocation5], 0
    // Predicated region
    $region2: #{inner_product.1} parent=1 // pred_check
      _
    $region3: #{inner_product.1} parent=1 // pred_check_branch
      %12 = sbr.rel (0) target = $region5
    $region4: #{inner_product.1} parent=1 // pred_region
      _
    $region5: #{inner_product.1} parent=1 // pred_fallthru
      _
    // Predicated region
    $region6: #{inner_product.1} parent=1 // pred_check
      _
    $region7: #{inner_product.1} parent=1 // pred_check_branch
      %14 = sbr.rel (0) target = $region9
    $region8: #{inner_product.1} parent=1 // pred_region
      _
    $region9: #{inner_product.1} parent=1 // pred_fallthru
      _
    // Predicated region
    $region10: #{inner_product.1} parent=1 // pred_check
      _
    $region11: #{inner_product.1} parent=1 // pred_check_branch
      %16 = sbr.rel (0) target = $region13
    $region12: #{inner_product.1} parent=1 // pred_region
      %s18 = ssub.s32 144, 144
      %19 = vsyncadd [#allocation3], %s18
      %s21 = sshll.u32 [#allocation2], 4
      %s22 = int_to_ptr.vmem [resolvable:$true] %s21
      %24 = dma.hbm_to_vmem [thread:$0]  %s2, 144, %s22, [#allocation3]
    $region13: #{inner_product.1} parent=1 // pred_fallthru
      _
    // Predicated region
    $region14: #{inner_product.1} parent=1 // pred_check
      _
    $region15: #{inner_product.1} parent=1 // pred_check_branch
      %26 = sbr.rel (0) target = $region17
    $region16: #{inner_product.1} parent=1 // pred_region
      %s28 = ssub.s32 55296, 55296
      %29 = vsyncadd [#allocation5], %s28
      %s30 = sshll.u32 [#allocation4], 4
      %s31 = int_to_ptr.vmem [resolvable:$true] %s30
      %36 = dma.hbm_to_vmem [thread:$0]  %s3, 55296, %s31, [#allocation5], 384, 384, 24
    $region17: #{inner_product.1} parent=1 // pred_fallthru
      _
    // Predicated region
    $region18: #{inner_product.1} parent=1 // pred_check
      _
    $region19: #{inner_product.1} parent=1 // pred_check_branch
      %38 = sbr.rel (0) target = $region21
    $region20: #{inner_product.1} parent=1 // pred_region
      %39 = dma.done [#allocation3], 144
    $region21: #{inner_product.1} parent=1 // pred_fallthru
      _
    // Predicated region
    $region22: #{inner_product.1} parent=1 // pred_check
      _
    $region23: #{inner_product.1} parent=1 // pred_check_branch
      %41 = sbr.rel (0) target = $region25
    $region24: #{inner_product.1} parent=1 // pred_region
      %42 = dma.done [#allocation5], 55296
    $region25: #{inner_product.1} parent=1 // pred_fallthru
      _
    %v43 = vld [vmem:[%s0] sm:$0xff]
    %v44 = vld [vmem:[%s0 + $0x8] sm:$0xff]
    %v45 = vld [vmem:[%s0 + $0x10] sm:$0x3]
    %v46 = vld [vmem:[%s1] sm:$0xff]
    %v47 = vld [vmem:[%s1 + $0x8] sm:$0xff]
    %v48 = vld [vmem:[%s1 + $0x10] sm:$0x3]
    %v49 = vmul.f32 %v43, %v46
    %v50 = vmul.f32 %v44, %v47
    %v51 = vmul.f32 %v45, %v48
    %v52 = vld [vmem:[#allocation2] sm:$0xff]
    %v53 = vld [vmem:[#allocation2 + $0x8] sm:$0x1]
    %v56 = vlaneseq
    %v57 = vshrl.u32 %v56, 7
    %v58 = vsub.s32 0, %v57
    %v59 = vrot.slane %v52, %v58
    %v60 = vlaneseq
    %v61 = vshrl.u32 %v60, 7
    %v62 = vsub.s32 1, %v61
    %v63 = vrot.slane %v52, %v62
    %v64 = vlaneseq
    %v65 = vshrl.u32 %v64, 7
    %v66 = vsub.s32 2, %v65
    %v67 = vrot.slane %v52, %v66
    %v68 = vlaneseq
    %v69 = vshrl.u32 %v68, 7
    %v70 = vsub.s32 3, %v69
    %v71 = vrot.slane %v52, %v70
    %v72 = vlaneseq
    %v73 = vshrl.u32 %v72, 7
    %v74 = vsub.s32 4, %v73
    %v75 = vrot.slane %v52, %v74
    %v76 = vlaneseq
    %v77 = vshrl.u32 %v76, 7
    %v78 = vsub.s32 5, %v77
    %v79 = vrot.slane %v52, %v78
    %v80 = vlaneseq
    %v81 = vshrl.u32 %v80, 7
    %v82 = vsub.s32 6, %v81
    %v83 = vrot.slane %v52, %v82
    %v84 = vlaneseq
    %v85 = vshrl.u32 %v84, 7
    %v86 = vsub.s32 7, %v85
    %v87 = vrot.slane %v52, %v86
    %v88 = vlaneseq
    %v89 = vshrl.u32 %v88, 7
    %v90 = vsub.s32 0, %v89
    %v91 = vrot.slane %v53, %v90
    %v92 = vcombine.low %v59, %v63
    %v93 = vcombine.low %v67, %v71
    %v95 = vunpack.c.l.s4 1983009808
    %v96 = vunpack.c.0.s8 %v95
    %v97 = vlaneseq
    %v98 = vshrl.u32 %v97, 7
    %v99 = vsub.s32 %v96, %v98
    %v100 = vrot.slane %v92, %v99
    %v102 = vunpack.c.l.s4 1983009808
    %v103 = vunpack.c.0.s8 %v102
    %v104 = vlaneseq
    %v105 = vshrl.u32 %v104, 7
    %v106 = vsub.s32 %v103, %v105
    %v107 = vrot.slane %v93, %v106
    %v108 = vcombine.low %v100, %v107
    %v109 = vcombine.low %v75, %v79
    %v110 = vcombine.low %v83, %v87
    %v112 = vunpack.c.l.s4 1983009808
    %v113 = vunpack.c.0.s8 %v112
    %v114 = vlaneseq
    %v115 = vshrl.u32 %v114, 7
    %v116 = vsub.s32 %v113, %v115
    %v117 = vrot.slane %v109, %v116
    %v119 = vunpack.c.l.s4 1983009808
    %v120 = vunpack.c.0.s8 %v119
    %v121 = vlaneseq
    %v122 = vshrl.u32 %v121, 7
    %v123 = vsub.s32 %v120, %v122
    %v124 = vrot.slane %v110, %v123
    %v125 = vcombine.low %v117, %v124
    %v127 = vunpack.c.l.s4 1983009808
    %v128 = vunpack.c.0.s8 %v127
    %v129 = vlaneseq
    %v130 = vshrl.u32 %v129, 7
    %v131 = vsub.s32 %v128, %v130
    %v132 = vrot.slane %v91, %v131
    %v136 = vmul.f32 %v49, %v108
    %v137 = vmul.f32 %v50, %v125
    %v138 = vmul.f32 %v51, %v132
    %v139 = vld [vmem:[#allocation4] sm:$0xff]
    %v140 = vld [vmem:[#allocation4 + $0x8] sm:$0xff]
    %v141 = vld [vmem:[#allocation4 + $0x10] sm:$0xff]
    %v142 = vld [vmem:[#allocation4 + $0x18] sm:$0xff]
    %v143 = vld [vmem:[#allocation4 + $0x20] sm:$0xff]
    %v144 = vld [vmem:[#allocation4 + $0x28] sm:$0xff]
    %v145 = vld [vmem:[#allocation4 + $0x30] sm:$0xff]
    %v146 = vld [vmem:[#allocation4 + $0x38] sm:$0xff]
    %v147 = vld [vmem:[#allocation4 + $0x40] sm:$0xff]
    %v148 = vld [vmem:[#allocation4 + $0x48] sm:$0xff]
    %v149 = vld [vmem:[#allocation4 + $0x50] sm:$0xff]
    %v150 = vld [vmem:[#allocation4 + $0x58] sm:$0xff]
    %v151 = vld [vmem:[#allocation4 + $0x60] sm:$0xff]
    %v152 = vld [vmem:[#allocation4 + $0x68] sm:$0xff]
    %v153 = vld [vmem:[#allocation4 + $0x70] sm:$0xff]
    %v154 = vld [vmem:[#allocation4 + $0x78] sm:$0xff]
    %v155 = vld [vmem:[#allocation4 + $0x80] sm:$0xff]
    %v156 = vld [vmem:[#allocation4 + $0x88] sm:$0xff]
    %v157 = vld [vmem:[#allocation4 + $0x90] sm:$0xff]
    %v158 = vld [vmem:[#allocation4 + $0x98] sm:$0xff]
    %v159 = vld [vmem:[#allocation4 + $0xa0] sm:$0xff]
    %v160 = vld [vmem:[#allocation4 + $0xa8] sm:$0xff]
    %v161 = vld [vmem:[#allocation4 + $0xb0] sm:$0xff]
    %v162 = vld [vmem:[#allocation4 + $0xb8] sm:$0xff]
    %v163 = vld [vmem:[#allocation4 + $0xc0] sm:$0xff]
    %v164 = vld [vmem:[#allocation4 + $0xc8] sm:$0xff]
    %v165 = vld [vmem:[#allocation4 + $0xd0] sm:$0xff]
    %v166 = vld [vmem:[#allocation4 + $0xd8] sm:$0xff]
    %v167 = vld [vmem:[#allocation4 + $0xe0] sm:$0xff]
    %v168 = vld [vmem:[#allocation4 + $0xe8] sm:$0xff]
    %v169 = vld [vmem:[#allocation4 + $0xf0] sm:$0xff]
    %v170 = vld [vmem:[#allocation4 + $0xf8] sm:$0xff]
    %v171 = vld [vmem:[#allocation4 + $0x100] sm:$0xff]
    %v172 = vld [vmem:[#allocation4 + $0x108] sm:$0xff]
    %v173 = vld [vmem:[#allocation4 + $0x110] sm:$0xff]
    %v174 = vld [vmem:[#allocation4 + $0x118] sm:$0xff]
    %v175 = vld [vmem:[#allocation4 + $0x120] sm:$0xff]
    %v176 = vld [vmem:[#allocation4 + $0x128] sm:$0xff]
    %v177 = vld [vmem:[#allocation4 + $0x130] sm:$0xff]
    %v178 = vld [vmem:[#allocation4 + $0x138] sm:$0xff]
    %v179 = vld [vmem:[#allocation4 + $0x140] sm:$0xff]
    %v180 = vld [vmem:[#allocation4 + $0x148] sm:$0xff]
    %v181 = vld [vmem:[#allocation4 + $0x150] sm:$0xff]
    %v182 = vld [vmem:[#allocation4 + $0x158] sm:$0xff]
    %v183 = vld [vmem:[#allocation4 + $0x160] sm:$0xff]
    %v184 = vld [vmem:[#allocation4 + $0x168] sm:$0xff]
    %v185 = vld [vmem:[#allocation4 + $0x170] sm:$0xff]
    %v186 = vld [vmem:[#allocation4 + $0x178] sm:$0xff]
    %v187 = vld [vmem:[#allocation4 + $0x180] sm:$0xff]
    %v188 = vld [vmem:[#allocation4 + $0x188] sm:$0xff]
    %v189 = vld [vmem:[#allocation4 + $0x190] sm:$0xff]
    %v190 = vld [vmem:[#allocation4 + $0x198] sm:$0xff]
    %v191 = vld [vmem:[#allocation4 + $0x1a0] sm:$0xff]
    %v192 = vld [vmem:[#allocation4 + $0x1a8] sm:$0xff]
    %v193 = vld [vmem:[#allocation4 + $0x1b0] sm:$0xff]
    %v194 = vld [vmem:[#allocation4 + $0x1b8] sm:$0xff]
    %v195 = vld [vmem:[#allocation4 + $0x1c0] sm:$0xff]
    %v196 = vld [vmem:[#allocation4 + $0x1c8] sm:$0xff]
    %v197 = vld [vmem:[#allocation4 + $0x1d0] sm:$0xff]
    %v198 = vld [vmem:[#allocation4 + $0x1d8] sm:$0xff]
    %v199 = vld [vmem:[#allocation4 + $0x1e0] sm:$0xff]
    %v200 = vld [vmem:[#allocation4 + $0x1e8] sm:$0xff]
    %v201 = vld [vmem:[#allocation4 + $0x1f0] sm:$0xff]
    %v202 = vld [vmem:[#allocation4 + $0x1f8] sm:$0xff]
    %v203 = vld [vmem:[#allocation4 + $0x200] sm:$0xff]
    %v204 = vld [vmem:[#allocation4 + $0x208] sm:$0xff]
    %v205 = vld [vmem:[#allocation4 + $0x210] sm:$0xff]
    %v206 = vld [vmem:[#allocation4 + $0x218] sm:$0xff]
    %v207 = vld [vmem:[#allocation4 + $0x220] sm:$0xff]
    %v208 = vld [vmem:[#allocation4 + $0x228] sm:$0xff]
    %v209 = vld [vmem:[#allocation4 + $0x230] sm:$0xff]
    %v210 = vld [vmem:[#allocation4 + $0x238] sm:$0xff]
    %v211 = vld [vmem:[#allocation4 + $0x240] sm:$0xff]
    %v212 = vld [vmem:[#allocation4 + $0x248] sm:$0xff]
    %v213 = vld [vmem:[#allocation4 + $0x250] sm:$0xff]
    %v214 = vld [vmem:[#allocation4 + $0x258] sm:$0xff]
    %v215 = vld [vmem:[#allocation4 + $0x260] sm:$0xff]
    %v216 = vld [vmem:[#allocation4 + $0x268] sm:$0xff]
    %v217 = vld [vmem:[#allocation4 + $0x270] sm:$0xff]
    %v218 = vld [vmem:[#allocation4 + $0x278] sm:$0xff]
    %v219 = vld [vmem:[#allocation4 + $0x280] sm:$0xff]
    %v220 = vld [vmem:[#allocation4 + $0x288] sm:$0xff]
    %v221 = vld [vmem:[#allocation4 + $0x290] sm:$0xff]
    %v222 = vld [vmem:[#allocation4 + $0x298] sm:$0xff]
    %v223 = vld [vmem:[#allocation4 + $0x2a0] sm:$0xff]
    %v224 = vld [vmem:[#allocation4 + $0x2a8] sm:$0xff]
    %v225 = vld [vmem:[#allocation4 + $0x2b0] sm:$0xff]
    %v226 = vld [vmem:[#allocation4 + $0x2b8] sm:$0xff]
    %v227 = vld [vmem:[#allocation4 + $0x2c0] sm:$0xff]
    %v228 = vld [vmem:[#allocation4 + $0x2c8] sm:$0xff]
    %v229 = vld [vmem:[#allocation4 + $0x2d0] sm:$0xff]
    %v230 = vld [vmem:[#allocation4 + $0x2d8] sm:$0xff]
    %v231 = vld [vmem:[#allocation4 + $0x2e0] sm:$0xff]
    %v232 = vld [vmem:[#allocation4 + $0x2e8] sm:$0xff]
    %v233 = vld [vmem:[#allocation4 + $0x2f0] sm:$0xff]
    %v234 = vld [vmem:[#allocation4 + $0x2f8] sm:$0xff]
    %v235 = vld [vmem:[#allocation4 + $0x300] sm:$0xff]
    %v236 = vld [vmem:[#allocation4 + $0x308] sm:$0xff]
    %v237 = vld [vmem:[#allocation4 + $0x310] sm:$0xff]
    %v238 = vld [vmem:[#allocation4 + $0x318] sm:$0xff]
    %v239 = vld [vmem:[#allocation4 + $0x320] sm:$0xff]
    %v240 = vld [vmem:[#allocation4 + $0x328] sm:$0xff]
    %v241 = vld [vmem:[#allocation4 + $0x330] sm:$0xff]
    %v242 = vld [vmem:[#allocation4 + $0x338] sm:$0xff]
    %v243 = vld [vmem:[#allocation4 + $0x340] sm:$0xff]
    %v244 = vld [vmem:[#allocation4 + $0x348] sm:$0xff]
    %v245 = vld [vmem:[#allocation4 + $0x350] sm:$0xff]
    %v246 = vld [vmem:[#allocation4 + $0x358] sm:$0xff]
    %v247 = vld [vmem:[#allocation4 + $0x360] sm:$0xff]
    %v248 = vld [vmem:[#allocation4 + $0x368] sm:$0xff]
    %v249 = vld [vmem:[#allocation4 + $0x370] sm:$0xff]
    %v250 = vld [vmem:[#allocation4 + $0x378] sm:$0xff]
    %v251 = vld [vmem:[#allocation4 + $0x380] sm:$0xff]
    %v252 = vld [vmem:[#allocation4 + $0x388] sm:$0xff]
    %v253 = vld [vmem:[#allocation4 + $0x390] sm:$0xff]
    %v254 = vld [vmem:[#allocation4 + $0x398] sm:$0xff]
    %v255 = vld [vmem:[#allocation4 + $0x3a0] sm:$0xff]
    %v256 = vld [vmem:[#allocation4 + $0x3a8] sm:$0xff]
    %v257 = vld [vmem:[#allocation4 + $0x3b0] sm:$0xff]
    %v258 = vld [vmem:[#allocation4 + $0x3b8] sm:$0xff]
    %v259 = vld [vmem:[#allocation4 + $0x3c0] sm:$0xff]
    %v260 = vld [vmem:[#allocation4 + $0x3c8] sm:$0xff]
    %v261 = vld [vmem:[#allocation4 + $0x3d0] sm:$0xff]
    %v262 = vld [vmem:[#allocation4 + $0x3d8] sm:$0xff]
    %v263 = vld [vmem:[#allocation4 + $0x3e0] sm:$0xff]
    %v264 = vld [vmem:[#allocation4 + $0x3e8] sm:$0xff]
    %v265 = vld [vmem:[#allocation4 + $0x3f0] sm:$0xff]
    %v266 = vld [vmem:[#allocation4 + $0x3f8] sm:$0xff]
    %v267 = vld [vmem:[#allocation4 + $0x400] sm:$0xff]
    %v268 = vld [vmem:[#allocation4 + $0x408] sm:$0xff]
    %v269 = vld [vmem:[#allocation4 + $0x410] sm:$0xff]
    %v270 = vld [vmem:[#allocation4 + $0x418] sm:$0xff]
    %v271 = vld [vmem:[#allocation4 + $0x420] sm:$0xff]
    %v272 = vld [vmem:[#allocation4 + $0x428] sm:$0xff]
    %v273 = vld [vmem:[#allocation4 + $0x430] sm:$0xff]
    %v274 = vld [vmem:[#allocation4 + $0x438] sm:$0xff]
    %v275 = vld [vmem:[#allocation4 + $0x440] sm:$0xff]
    %v276 = vld [vmem:[#allocation4 + $0x448] sm:$0xff]
    %v277 = vld [vmem:[#allocation4 + $0x450] sm:$0xff]
    %v278 = vld [vmem:[#allocation4 + $0x458] sm:$0xff]
    %v279 = vld [vmem:[#allocation4 + $0x460] sm:$0xff]
    %v280 = vld [vmem:[#allocation4 + $0x468] sm:$0xff]
    %v281 = vld [vmem:[#allocation4 + $0x470] sm:$0xff]
    %v282 = vld [vmem:[#allocation4 + $0x478] sm:$0xff]
    %v283 = vld [vmem:[#allocation4 + $0x480] sm:$0xff]
    %v284 = vld [vmem:[#allocation4 + $0x488] sm:$0xff]
    %v285 = vld [vmem:[#allocation4 + $0x490] sm:$0xff]
    %v286 = vld [vmem:[#allocation4 + $0x498] sm:$0xff]
    %v287 = vld [vmem:[#allocation4 + $0x4a0] sm:$0xff]
    %v288 = vld [vmem:[#allocation4 + $0x4a8] sm:$0xff]
    %v289 = vld [vmem:[#allocation4 + $0x4b0] sm:$0xff]
    %v290 = vld [vmem:[#allocation4 + $0x4b8] sm:$0xff]
    %v291 = vld [vmem:[#allocation4 + $0x4c0] sm:$0xff]
    %v292 = vld [vmem:[#allocation4 + $0x4c8] sm:$0xff]
    %v293 = vld [vmem:[#allocation4 + $0x4d0] sm:$0xff]
    %v294 = vld [vmem:[#allocation4 + $0x4d8] sm:$0xff]
    %v295 = vld [vmem:[#allocation4 + $0x4e0] sm:$0xff]
    %v296 = vld [vmem:[#allocation4 + $0x4e8] sm:$0xff]
    %v297 = vld [vmem:[#allocation4 + $0x4f0] sm:$0xff]
    %v298 = vld [vmem:[#allocation4 + $0x4f8] sm:$0xff]
    %v299 = vld [vmem:[#allocation4 + $0x500] sm:$0xff]
    %v300 = vld [vmem:[#allocation4 + $0x508] sm:$0xff]
    %v301 = vld [vmem:[#allocation4 + $0x510] sm:$0xff]
    %v302 = vld [vmem:[#allocation4 + $0x518] sm:$0xff]
    %v303 = vld [vmem:[#allocation4 + $0x520] sm:$0xff]
    %v304 = vld [vmem:[#allocation4 + $0x528] sm:$0xff]
    %v305 = vld [vmem:[#allocation4 + $0x530] sm:$0xff]
    %v306 = vld [vmem:[#allocation4 + $0x538] sm:$0xff]
    %v307 = vld [vmem:[#allocation4 + $0x540] sm:$0xff]
    %v308 = vld [vmem:[#allocation4 + $0x548] sm:$0xff]
    %v309 = vld [vmem:[#allocation4 + $0x550] sm:$0xff]
    %v310 = vld [vmem:[#allocation4 + $0x558] sm:$0xff]
    %v311 = vld [vmem:[#allocation4 + $0x560] sm:$0xff]
    %v312 = vld [vmem:[#allocation4 + $0x568] sm:$0xff]
    %v313 = vld [vmem:[#allocation4 + $0x570] sm:$0xff]
    %v314 = vld [vmem:[#allocation4 + $0x578] sm:$0xff]
    %v315 = vld [vmem:[#allocation4 + $0x580] sm:$0xff]
    %v316 = vld [vmem:[#allocation4 + $0x588] sm:$0xff]
    %v317 = vld [vmem:[#allocation4 + $0x590] sm:$0xff]
    %v318 = vld [vmem:[#allocation4 + $0x598] sm:$0xff]
    %v319 = vld [vmem:[#allocation4 + $0x5a0] sm:$0xff]
    %v320 = vld [vmem:[#allocation4 + $0x5a8] sm:$0xff]
    %v321 = vld [vmem:[#allocation4 + $0x5b0] sm:$0xff]
    %v322 = vld [vmem:[#allocation4 + $0x5b8] sm:$0xff]
    %v323 = vld [vmem:[#allocation4 + $0x5c0] sm:$0xff]
    %v324 = vld [vmem:[#allocation4 + $0x5c8] sm:$0xff]
    %v325 = vld [vmem:[#allocation4 + $0x5d0] sm:$0xff]
    %v326 = vld [vmem:[#allocation4 + $0x5d8] sm:$0xff]
    %v327 = vld [vmem:[#allocation4 + $0x5e0] sm:$0xff]
    %v328 = vld [vmem:[#allocation4 + $0x5e8] sm:$0xff]
    %v329 = vld [vmem:[#allocation4 + $0x5f0] sm:$0xff]
    %v330 = vld [vmem:[#allocation4 + $0x5f8] sm:$0xff]
    %v331 = vld [vmem:[#allocation4 + $0x600] sm:$0xff]
    %v332 = vld [vmem:[#allocation4 + $0x608] sm:$0xff]
    %v333 = vld [vmem:[#allocation4 + $0x610] sm:$0xff]
    %v334 = vld [vmem:[#allocation4 + $0x618] sm:$0xff]
    %v335 = vld [vmem:[#allocation4 + $0x620] sm:$0xff]
    %v336 = vld [vmem:[#allocation4 + $0x628] sm:$0xff]
    %v337 = vld [vmem:[#allocation4 + $0x630] sm:$0xff]
    %v338 = vld [vmem:[#allocation4 + $0x638] sm:$0xff]
    %v339 = vld [vmem:[#allocation4 + $0x640] sm:$0xff]
    %v340 = vld [vmem:[#allocation4 + $0x648] sm:$0xff]
    %v341 = vld [vmem:[#allocation4 + $0x650] sm:$0xff]
    %v342 = vld [vmem:[#allocation4 + $0x658] sm:$0xff]
    %v343 = vld [vmem:[#allocation4 + $0x660] sm:$0xff]
    %v344 = vld [vmem:[#allocation4 + $0x668] sm:$0xff]
    %v345 = vld [vmem:[#allocation4 + $0x670] sm:$0xff]
    %v346 = vld [vmem:[#allocation4 + $0x678] sm:$0xff]
    %v347 = vld [vmem:[#allocation4 + $0x680] sm:$0xff]
    %v348 = vld [vmem:[#allocation4 + $0x688] sm:$0xff]
    %v349 = vld [vmem:[#allocation4 + $0x690] sm:$0xff]
    %v350 = vld [vmem:[#allocation4 + $0x698] sm:$0xff]
    %v351 = vld [vmem:[#allocation4 + $0x6a0] sm:$0xff]
    %v352 = vld [vmem:[#allocation4 + $0x6a8] sm:$0xff]
    %v353 = vld [vmem:[#allocation4 + $0x6b0] sm:$0xff]
    %v354 = vld [vmem:[#allocation4 + $0x6b8] sm:$0xff]
    %v355 = vld [vmem:[#allocation4 + $0x6c0] sm:$0xff]
    %v356 = vld [vmem:[#allocation4 + $0x6c8] sm:$0xff]
    %v357 = vld [vmem:[#allocation4 + $0x6d0] sm:$0xff]
    %v358 = vld [vmem:[#allocation4 + $0x6d8] sm:$0xff]
    %v359 = vld [vmem:[#allocation4 + $0x6e0] sm:$0xff]
    %v360 = vld [vmem:[#allocation4 + $0x6e8] sm:$0xff]
    %v361 = vld [vmem:[#allocation4 + $0x6f0] sm:$0xff]
    %v362 = vld [vmem:[#allocation4 + $0x6f8] sm:$0xff]
    %v363 = vld [vmem:[#allocation4 + $0x700] sm:$0xff]
    %v364 = vld [vmem:[#allocation4 + $0x708] sm:$0xff]
    %v365 = vld [vmem:[#allocation4 + $0x710] sm:$0xff]
    %v366 = vld [vmem:[#allocation4 + $0x718] sm:$0xff]
    %v367 = vld [vmem:[#allocation4 + $0x720] sm:$0xff]
    %v368 = vld [vmem:[#allocation4 + $0x728] sm:$0xff]
    %v369 = vld [vmem:[#allocation4 + $0x730] sm:$0xff]
    %v370 = vld [vmem:[#allocation4 + $0x738] sm:$0xff]
    %v371 = vld [vmem:[#allocation4 + $0x740] sm:$0xff]
    %v372 = vld [vmem:[#allocation4 + $0x748] sm:$0xff]
    %v373 = vld [vmem:[#allocation4 + $0x750] sm:$0xff]
    %v374 = vld [vmem:[#allocation4 + $0x758] sm:$0xff]
    %v375 = vld [vmem:[#allocation4 + $0x760] sm:$0xff]
    %v376 = vld [vmem:[#allocation4 + $0x768] sm:$0xff]
    %v377 = vld [vmem:[#allocation4 + $0x770] sm:$0xff]
    %v378 = vld [vmem:[#allocation4 + $0x778] sm:$0xff]
    %v379 = vld [vmem:[#allocation4 + $0x780] sm:$0xff]
    %v380 = vld [vmem:[#allocation4 + $0x788] sm:$0xff]
    %v381 = vld [vmem:[#allocation4 + $0x790] sm:$0xff]
    %v382 = vld [vmem:[#allocation4 + $0x798] sm:$0xff]
    %v383 = vld [vmem:[#allocation4 + $0x7a0] sm:$0xff]
    %v384 = vld [vmem:[#allocation4 + $0x7a8] sm:$0xff]
    %v385 = vld [vmem:[#allocation4 + $0x7b0] sm:$0xff]
    %v386 = vld [vmem:[#allocation4 + $0x7b8] sm:$0xff]
    %v387 = vld [vmem:[#allocation4 + $0x7c0] sm:$0xff]
    %v388 = vld [vmem:[#allocation4 + $0x7c8] sm:$0xff]
    %v389 = vld [vmem:[#allocation4 + $0x7d0] sm:$0xff]
    %v390 = vld [vmem:[#allocation4 + $0x7d8] sm:$0xff]
    %v391 = vld [vmem:[#allocation4 + $0x7e0] sm:$0xff]
    %v392 = vld [vmem:[#allocation4 + $0x7e8] sm:$0xff]
    %v393 = vld [vmem:[#allocation4 + $0x7f0] sm:$0xff]
    %v394 = vld [vmem:[#allocation4 + $0x7f8] sm:$0xff]
    %v395 = vld [vmem:[#allocation4 + $0x800] sm:$0xff]
    %v396 = vld [vmem:[#allocation4 + $0x808] sm:$0xff]
    %v397 = vld [vmem:[#allocation4 + $0x810] sm:$0xff]
    %v398 = vld [vmem:[#allocation4 + $0x818] sm:$0xff]
    %v399 = vld [vmem:[#allocation4 + $0x820] sm:$0xff]
    %v400 = vld [vmem:[#allocation4 + $0x828] sm:$0xff]
    %v401 = vld [vmem:[#allocation4 + $0x830] sm:$0xff]
    %v402 = vld [vmem:[#allocation4 + $0x838] sm:$0xff]
    %v403 = vld [vmem:[#allocation4 + $0x840] sm:$0xff]
    %v404 = vld [vmem:[#allocation4 + $0x848] sm:$0xff]
    %v405 = vld [vmem:[#allocation4 + $0x850] sm:$0xff]
    %v406 = vld [vmem:[#allocation4 + $0x858] sm:$0xff]
    %v407 = vld [vmem:[#allocation4 + $0x860] sm:$0xff]
    %v408 = vld [vmem:[#allocation4 + $0x868] sm:$0xff]
    %v409 = vld [vmem:[#allocation4 + $0x870] sm:$0xff]
    %v410 = vld [vmem:[#allocation4 + $0x878] sm:$0xff]
    %v411 = vld [vmem:[#allocation4 + $0x880] sm:$0xff]
    %v412 = vld [vmem:[#allocation4 + $0x888] sm:$0xff]
    %v413 = vld [vmem:[#allocation4 + $0x890] sm:$0xff]
    %v414 = vld [vmem:[#allocation4 + $0x898] sm:$0xff]
    %v415 = vld [vmem:[#allocation4 + $0x8a0] sm:$0xff]
    %v416 = vld [vmem:[#allocation4 + $0x8a8] sm:$0xff]
    %v417 = vld [vmem:[#allocation4 + $0x8b0] sm:$0xff]
    %v418 = vld [vmem:[#allocation4 + $0x8b8] sm:$0xff]
    %v419 = vld [vmem:[#allocation4 + $0x8c0] sm:$0xff]
    %v420 = vld [vmem:[#allocation4 + $0x8c8] sm:$0xff]
    %v421 = vld [vmem:[#allocation4 + $0x8d0] sm:$0xff]
    %v422 = vld [vmem:[#allocation4 + $0x8d8] sm:$0xff]
    %v423 = vld [vmem:[#allocation4 + $0x8e0] sm:$0xff]
    %v424 = vld [vmem:[#allocation4 + $0x8e8] sm:$0xff]
    %v425 = vld [vmem:[#allocation4 + $0x8f0] sm:$0xff]
    %v426 = vld [vmem:[#allocation4 + $0x8f8] sm:$0xff]
    %v427 = vld [vmem:[#allocation4 + $0x900] sm:$0xff]
    %v428 = vld [vmem:[#allocation4 + $0x908] sm:$0xff]
    %v429 = vld [vmem:[#allocation4 + $0x910] sm:$0xff]
    %v430 = vld [vmem:[#allocation4 + $0x918] sm:$0xff]
    %v431 = vld [vmem:[#allocation4 + $0x920] sm:$0xff]
    %v432 = vld [vmem:[#allocation4 + $0x928] sm:$0xff]
    %v433 = vld [vmem:[#allocation4 + $0x930] sm:$0xff]
    %v434 = vld [vmem:[#allocation4 + $0x938] sm:$0xff]
    %v435 = vld [vmem:[#allocation4 + $0x940] sm:$0xff]
    %v436 = vld [vmem:[#allocation4 + $0x948] sm:$0xff]
    %v437 = vld [vmem:[#allocation4 + $0x950] sm:$0xff]
    %v438 = vld [vmem:[#allocation4 + $0x958] sm:$0xff]
    %v439 = vld [vmem:[#allocation4 + $0x960] sm:$0xff]
    %v440 = vld [vmem:[#allocation4 + $0x968] sm:$0xff]
    %v441 = vld [vmem:[#allocation4 + $0x970] sm:$0xff]
    %v442 = vld [vmem:[#allocation4 + $0x978] sm:$0xff]
    %v443 = vld [vmem:[#allocation4 + $0x980] sm:$0xff]
    %v444 = vld [vmem:[#allocation4 + $0x988] sm:$0xff]
    %v445 = vld [vmem:[#allocation4 + $0x990] sm:$0xff]
    %v446 = vld [vmem:[#allocation4 + $0x998] sm:$0xff]
    %v447 = vld [vmem:[#allocation4 + $0x9a0] sm:$0xff]
    %v448 = vld [vmem:[#allocation4 + $0x9a8] sm:$0xff]
    %v449 = vld [vmem:[#allocation4 + $0x9b0] sm:$0xff]
    %v450 = vld [vmem:[#allocation4 + $0x9b8] sm:$0xff]
    %v451 = vld [vmem:[#allocation4 + $0x9c0] sm:$0xff]
    %v452 = vld [vmem:[#allocation4 + $0x9c8] sm:$0xff]
    %v453 = vld [vmem:[#allocation4 + $0x9d0] sm:$0xff]
    %v454 = vld [vmem:[#allocation4 + $0x9d8] sm:$0xff]
    %v455 = vld [vmem:[#allocation4 + $0x9e0] sm:$0xff]
    %v456 = vld [vmem:[#allocation4 + $0x9e8] sm:$0xff]
    %v457 = vld [vmem:[#allocation4 + $0x9f0] sm:$0xff]
    %v458 = vld [vmem:[#allocation4 + $0x9f8] sm:$0xff]
    %v459 = vld [vmem:[#allocation4 + $0xa00] sm:$0xff]
    %v460 = vld [vmem:[#allocation4 + $0xa08] sm:$0xff]
    %v461 = vld [vmem:[#allocation4 + $0xa10] sm:$0xff]
    %v462 = vld [vmem:[#allocation4 + $0xa18] sm:$0xff]
    %v463 = vld [vmem:[#allocation4 + $0xa20] sm:$0xff]
    %v464 = vld [vmem:[#allocation4 + $0xa28] sm:$0xff]
    %v465 = vld [vmem:[#allocation4 + $0xa30] sm:$0xff]
    %v466 = vld [vmem:[#allocation4 + $0xa38] sm:$0xff]
    %v467 = vld [vmem:[#allocation4 + $0xa40] sm:$0xff]
    %v468 = vld [vmem:[#allocation4 + $0xa48] sm:$0xff]
    %v469 = vld [vmem:[#allocation4 + $0xa50] sm:$0xff]
    %v470 = vld [vmem:[#allocation4 + $0xa58] sm:$0xff]
    %v471 = vld [vmem:[#allocation4 + $0xa60] sm:$0xff]
    %v472 = vld [vmem:[#allocation4 + $0xa68] sm:$0xff]
    %v473 = vld [vmem:[#allocation4 + $0xa70] sm:$0xff]
    %v474 = vld [vmem:[#allocation4 + $0xa78] sm:$0xff]
    %v475 = vld [vmem:[#allocation4 + $0xa80] sm:$0xff]
    %v476 = vld [vmem:[#allocation4 + $0xa88] sm:$0xff]
    %v477 = vld [vmem:[#allocation4 + $0xa90] sm:$0xff]
    %v478 = vld [vmem:[#allocation4 + $0xa98] sm:$0xff]
    %v479 = vld [vmem:[#allocation4 + $0xaa0] sm:$0xff]
    %v480 = vld [vmem:[#allocation4 + $0xaa8] sm:$0xff]
    %v481 = vld [vmem:[#allocation4 + $0xab0] sm:$0xff]
    %v482 = vld [vmem:[#allocation4 + $0xab8] sm:$0xff]
    %v483 = vld [vmem:[#allocation4 + $0xac0] sm:$0xff]
    %v484 = vld [vmem:[#allocation4 + $0xac8] sm:$0xff]
    %v485 = vld [vmem:[#allocation4 + $0xad0] sm:$0xff]
    %v486 = vld [vmem:[#allocation4 + $0xad8] sm:$0xff]
    %v487 = vld [vmem:[#allocation4 + $0xae0] sm:$0xff]
    %v488 = vld [vmem:[#allocation4 + $0xae8] sm:$0xff]
    %v489 = vld [vmem:[#allocation4 + $0xaf0] sm:$0xff]
    %v490 = vld [vmem:[#allocation4 + $0xaf8] sm:$0xff]
    %v491 = vld [vmem:[#allocation4 + $0xb00] sm:$0xff]
    %v492 = vld [vmem:[#allocation4 + $0xb08] sm:$0xff]
    %v493 = vld [vmem:[#allocation4 + $0xb10] sm:$0xff]
    %v494 = vld [vmem:[#allocation4 + $0xb18] sm:$0xff]
    %v495 = vld [vmem:[#allocation4 + $0xb20] sm:$0xff]
    %v496 = vld [vmem:[#allocation4 + $0xb28] sm:$0xff]
    %v497 = vld [vmem:[#allocation4 + $0xb30] sm:$0xff]
    %v498 = vld [vmem:[#allocation4 + $0xb38] sm:$0xff]
    %v499 = vld [vmem:[#allocation4 + $0xb40] sm:$0xff]
    %v500 = vld [vmem:[#allocation4 + $0xb48] sm:$0xff]
    %v501 = vld [vmem:[#allocation4 + $0xb50] sm:$0xff]
    %v502 = vld [vmem:[#allocation4 + $0xb58] sm:$0xff]
    %v503 = vld [vmem:[#allocation4 + $0xb60] sm:$0xff]
    %v504 = vld [vmem:[#allocation4 + $0xb68] sm:$0xff]
    %v505 = vld [vmem:[#allocation4 + $0xb70] sm:$0xff]
    %v506 = vld [vmem:[#allocation4 + $0xb78] sm:$0xff]
    %v507 = vld [vmem:[#allocation4 + $0xb80] sm:$0xff]
    %v508 = vld [vmem:[#allocation4 + $0xb88] sm:$0xff]
    %v509 = vld [vmem:[#allocation4 + $0xb90] sm:$0xff]
    %v510 = vld [vmem:[#allocation4 + $0xb98] sm:$0xff]
    %v511 = vld [vmem:[#allocation4 + $0xba0] sm:$0xff]
    %v512 = vld [vmem:[#allocation4 + $0xba8] sm:$0xff]
    %v513 = vld [vmem:[#allocation4 + $0xbb0] sm:$0xff]
    %v514 = vld [vmem:[#allocation4 + $0xbb8] sm:$0xff]
    %v515 = vld [vmem:[#allocation4 + $0xbc0] sm:$0xff]
    %v516 = vld [vmem:[#allocation4 + $0xbc8] sm:$0xff]
    %v517 = vld [vmem:[#allocation4 + $0xbd0] sm:$0xff]
    %v518 = vld [vmem:[#allocation4 + $0xbd8] sm:$0xff]
    %v519 = vld [vmem:[#allocation4 + $0xbe0] sm:$0xff]
    %v520 = vld [vmem:[#allocation4 + $0xbe8] sm:$0xff]
    %v521 = vld [vmem:[#allocation4 + $0xbf0] sm:$0xff]
    %v522 = vld [vmem:[#allocation4 + $0xbf8] sm:$0xff]
    %v523 = vld [vmem:[#allocation4 + $0xc00] sm:$0xff]
    %v524 = vld [vmem:[#allocation4 + $0xc08] sm:$0xff]
    %v525 = vld [vmem:[#allocation4 + $0xc10] sm:$0xff]
    %v526 = vld [vmem:[#allocation4 + $0xc18] sm:$0xff]
    %v527 = vld [vmem:[#allocation4 + $0xc20] sm:$0xff]
    %v528 = vld [vmem:[#allocation4 + $0xc28] sm:$0xff]
    %v529 = vld [vmem:[#allocation4 + $0xc30] sm:$0xff]
    %v530 = vld [vmem:[#allocation4 + $0xc38] sm:$0xff]
    %v531 = vld [vmem:[#allocation4 + $0xc40] sm:$0xff]
    %v532 = vld [vmem:[#allocation4 + $0xc48] sm:$0xff]
    %v533 = vld [vmem:[#allocation4 + $0xc50] sm:$0xff]
    %v534 = vld [vmem:[#allocation4 + $0xc58] sm:$0xff]
    %v535 = vld [vmem:[#allocation4 + $0xc60] sm:$0xff]
    %v536 = vld [vmem:[#allocation4 + $0xc68] sm:$0xff]
    %v537 = vld [vmem:[#allocation4 + $0xc70] sm:$0xff]
    %v538 = vld [vmem:[#allocation4 + $0xc78] sm:$0xff]
    %v539 = vld [vmem:[#allocation4 + $0xc80] sm:$0xff]
    %v540 = vld [vmem:[#allocation4 + $0xc88] sm:$0xff]
    %v541 = vld [vmem:[#allocation4 + $0xc90] sm:$0xff]
    %v542 = vld [vmem:[#allocation4 + $0xc98] sm:$0xff]
    %v543 = vld [vmem:[#allocation4 + $0xca0] sm:$0xff]
    %v544 = vld [vmem:[#allocation4 + $0xca8] sm:$0xff]
    %v545 = vld [vmem:[#allocation4 + $0xcb0] sm:$0xff]
    %v546 = vld [vmem:[#allocation4 + $0xcb8] sm:$0xff]
    %v547 = vld [vmem:[#allocation4 + $0xcc0] sm:$0xff]
    %v548 = vld [vmem:[#allocation4 + $0xcc8] sm:$0xff]
    %v549 = vld [vmem:[#allocation4 + $0xcd0] sm:$0xff]
    %v550 = vld [vmem:[#allocation4 + $0xcd8] sm:$0xff]
    %v551 = vld [vmem:[#allocation4 + $0xce0] sm:$0xff]
    %v552 = vld [vmem:[#allocation4 + $0xce8] sm:$0xff]
    %v553 = vld [vmem:[#allocation4 + $0xcf0] sm:$0xff]
    %v554 = vld [vmem:[#allocation4 + $0xcf8] sm:$0xff]
    %v555 = vld [vmem:[#allocation4 + $0xd00] sm:$0xff]
    %v556 = vld [vmem:[#allocation4 + $0xd08] sm:$0xff]
    %v557 = vld [vmem:[#allocation4 + $0xd10] sm:$0xff]
    %v558 = vld [vmem:[#allocation4 + $0xd18] sm:$0xff]
    %v559 = vld [vmem:[#allocation4 + $0xd20] sm:$0xff]
    %v560 = vld [vmem:[#allocation4 + $0xd28] sm:$0xff]
    %v561 = vld [vmem:[#allocation4 + $0xd30] sm:$0xff]
    %v562 = vld [vmem:[#allocation4 + $0xd38] sm:$0xff]
    %v563 = vld [vmem:[#allocation4 + $0xd40] sm:$0xff]
    %v564 = vld [vmem:[#allocation4 + $0xd48] sm:$0xff]
    %v565 = vld [vmem:[#allocation4 + $0xd50] sm:$0xff]
    %v566 = vld [vmem:[#allocation4 + $0xd58] sm:$0xff]
    %v567 = vld [vmem:[#allocation4 + $0xd60] sm:$0xff]
    %v568 = vld [vmem:[#allocation4 + $0xd68] sm:$0xff]
    %v569 = vld [vmem:[#allocation4 + $0xd70] sm:$0xff]
    %v570 = vld [vmem:[#allocation4 + $0xd78] sm:$0xff]
    %v574 = vcombine.high %v136, %v136
    %v576 = vunpack.c.l.s4 1983009808
    %v577 = vunpack.c.0.s8 %v576
    %v578 = vlaneseq
    %v579 = vshrl.u32 %v578, 7
    %v580 = vsub.s32 %v577, %v579
    %v581 = vrot.slane %v136, %v580
    %v583 = vunpack.c.l.s4 1983009808
    %v584 = vunpack.c.0.s8 %v583
    %v585 = vlaneseq
    %v586 = vshrl.u32 %v585, 7
    %v587 = vsub.s32 %v584, %v586
    %v588 = vrot.slane %v574, %v587
    %v589 = vcombine.high %v581, %v581
    %v590 = vcombine.high %v588, %v588
    %v591 = vcombine.high %v137, %v137
    %v593 = vunpack.c.l.s4 1983009808
    %v594 = vunpack.c.0.s8 %v593
    %v595 = vlaneseq
    %v596 = vshrl.u32 %v595, 7
    %v597 = vsub.s32 %v594, %v596
    %v598 = vrot.slane %v137, %v597
    %v600 = vunpack.c.l.s4 1983009808
    %v601 = vunpack.c.0.s8 %v600
    %v602 = vlaneseq
    %v603 = vshrl.u32 %v602, 7
    %v604 = vsub.s32 %v601, %v603
    %v605 = vrot.slane %v591, %v604
    %v606 = vcombine.high %v598, %v598
    %v607 = vcombine.high %v605, %v605
    %v609 = vunpack.c.l.s4 1983009808
    %v610 = vunpack.c.0.s8 %v609
    %v611 = vlaneseq
    %v612 = vshrl.u32 %v611, 7
    %v613 = vsub.s32 %v610, %v612
    %v614 = vrot.slane %v138, %v613
    %624 = vmatprep.subr.mxu0 %v140
    %625 = vmatpush1.msra.mxu0 %v139
    %626 = vmatprep.subr.mxu0 %v143
    %627 = vmatpush1.msra.mxu0 %v142
    %628 = vmatprep.subr.mxu0 %v146
    %629 = vmatpush1.msra.mxu0 %v145
    %630 = vmatprep.subr.mxu0 %v149
    %631 = vmatpush1.msra.mxu0 %v148
    %632 = vmatprep.subr.mxu0 %v152
    %633 = vmatpush1.msra.mxu0 %v151
    %634 = vmatprep.subr.mxu0 %v155
    %635 = vmatpush1.msra.mxu0 %v154
    %636 = vmatprep.subr.mxu0 %v158
    %637 = vmatpush1.msra.mxu0 %v157
    %638 = vmatprep.subr.mxu0 %v161
    %639 = vmatpush1.msra.mxu0 %v160
    %640 = vmatprep.subr.mxu0 %v164
    %641 = vmatpush1.msra.mxu0 %v163
    %642 = vmatprep.subr.mxu0 %v167
    %643 = vmatpush1.msra.mxu0 %v166
    %644 = vmatprep.subr.mxu0 %v170
    %645 = vmatpush1.msra.mxu0 %v169
    %646 = vmatprep.subr.mxu0 %v173
    %647 = vmatpush1.msra.mxu0 %v172
    %648 = vmatprep.subr.mxu0 %v176
    %649 = vmatpush1.msra.mxu0 %v175
    %650 = vmatprep.subr.mxu0 %v179
    %651 = vmatpush1.msra.mxu0 %v178
    %652 = vmatprep.subr.mxu0 %v182
    %653 = vmatpush1.msra.mxu0 %v181
    %654 = vmatprep.subr.mxu0 %v185
    %655 = vmatpush1.msra.mxu0 %v184
    %656 = vmatprep.subr.mxu0 %v188
    %657 = vmatpush1.msra.mxu0 %v187
    %658 = vmatprep.subr.mxu0 %v191
    %659 = vmatpush1.msra.mxu0 %v190
    %660 = vmatprep.subr.mxu0 %v194
    %661 = vmatpush1.msra.mxu0 %v193
    %662 = vmatprep.subr.mxu0 %v197
    %663 = vmatpush1.msra.mxu0 %v196
    %664 = vmatprep.subr.mxu0 %v200
    %665 = vmatpush1.msra.mxu0 %v199
    %666 = vmatprep.subr.mxu0 %v203
    %667 = vmatpush1.msra.mxu0 %v202
    %668 = vmatprep.subr.mxu0 %v206
    %669 = vmatpush1.msra.mxu0 %v205
    %670 = vmatprep.subr.mxu0 %v209
    %671 = vmatpush1.msra.mxu0 %v208
    %672 = vmatprep.subr.mxu0 %v212
    %673 = vmatpush1.msra.mxu0 %v211
    %674 = vmatprep.subr.mxu0 %v215
    %675 = vmatpush1.msra.mxu0 %v214
    %676 = vmatprep.subr.mxu0 %v218
    %677 = vmatpush1.msra.mxu0 %v217
    %678 = vmatprep.subr.mxu0 %v221
    %679 = vmatpush1.msra.mxu0 %v220
    %680 = vmatprep.subr.mxu0 %v224
    %681 = vmatpush1.msra.mxu0 %v223
    %682 = vmatprep.subr.mxu0 %v227
    %683 = vmatpush1.msra.mxu0 %v226
    %684 = vmatprep.subr.mxu0 %v230
    %685 = vmatpush1.msra.mxu0 %v229
    %686 = vmatprep.subr.mxu0 %v233
    %687 = vmatpush1.msra.mxu0 %v232
    %688 = vmatprep.mubr.f32.mxu0 %v589
    %689 = vmatmul.mubr.f32.gmra.mrb[0].mxu0 %v581
    %v690 = vpop.f32.mrb[0].mxu0
    %v691 = vadd.f32 0.0, %v690
    %v692 = vpop.f32.mrb[0].mxu0
    %v693 = vadd.f32 0.0, %v692
    %694 = vdwg.mxu0
    %695 = vmatprep.subr.mxu0 %v236
    %696 = vmatpush1.msra.mxu0 %v235
    %697 = vmatprep.subr.mxu0 %v239
    %698 = vmatpush1.msra.mxu0 %v238
    %699 = vmatprep.subr.mxu0 %v242
    %700 = vmatpush1.msra.mxu0 %v241
    %701 = vmatprep.subr.mxu0 %v245
    %702 = vmatpush1.msra.mxu0 %v244
    %703 = vmatprep.subr.mxu0 %v248
    %704 = vmatpush1.msra.mxu0 %v247
    %705 = vmatprep.subr.mxu0 %v251
    %706 = vmatpush1.msra.mxu0 %v250
    %707 = vmatprep.subr.mxu0 %v254
    %708 = vmatpush1.msra.mxu0 %v253
    %709 = vmatprep.subr.mxu0 %v257
    %710 = vmatpush1.msra.mxu0 %v256
    %711 = vmatprep.subr.mxu0 %v260
    %712 = vmatpush1.msra.mxu0 %v259
    %713 = vmatprep.subr.mxu0 %v263
    %714 = vmatpush1.msra.mxu0 %v262
    %715 = vmatprep.subr.mxu0 %v266
    %716 = vmatpush1.msra.mxu0 %v265
    %717 = vmatprep.subr.mxu0 %v269
    %718 = vmatpush1.msra.mxu0 %v268
    %719 = vmatprep.subr.mxu0 %v272
    %720 = vmatpush1.msra.mxu0 %v271
    %721 = vmatprep.subr.mxu0 %v275
    %722 = vmatpush1.msra.mxu0 %v274
    %723 = vmatprep.subr.mxu0 %v278
    %724 = vmatpush1.msra.mxu0 %v277
    %725 = vmatprep.subr.mxu0 %v281
    %726 = vmatpush1.msra.mxu0 %v280
    %727 = vmatprep.subr.mxu0 %v284
    %728 = vmatpush1.msra.mxu0 %v283
    %729 = vmatprep.subr.mxu0 %v287
    %730 = vmatpush1.msra.mxu0 %v286
    %731 = vmatprep.subr.mxu0 %v290
    %732 = vmatpush1.msra.mxu0 %v289
    %733 = vmatprep.subr.mxu0 %v293
    %734 = vmatpush1.msra.mxu0 %v292
    %735 = vmatprep.subr.mxu0 %v296
    %736 = vmatpush1.msra.mxu0 %v295
    %737 = vmatprep.subr.mxu0 %v299
    %738 = vmatpush1.msra.mxu0 %v298
    %739 = vmatprep.subr.mxu0 %v302
    %740 = vmatpush1.msra.mxu0 %v301
    %741 = vmatprep.subr.mxu0 %v305
    %742 = vmatpush1.msra.mxu0 %v304
    %743 = vmatprep.subr.mxu0 %v308
    %744 = vmatpush1.msra.mxu0 %v307
    %745 = vmatprep.subr.mxu0 %v311
    %746 = vmatpush1.msra.mxu0 %v310
    %747 = vmatprep.subr.mxu0 %v314
    %748 = vmatpush1.msra.mxu0 %v313
    %749 = vmatprep.subr.mxu0 %v317
    %750 = vmatpush1.msra.mxu0 %v316
    %751 = vmatprep.subr.mxu0 %v320
    %752 = vmatpush1.msra.mxu0 %v319
    %753 = vmatprep.subr.mxu0 %v323
    %754 = vmatpush1.msra.mxu0 %v322
    %755 = vmatprep.subr.mxu0 %v326
    %756 = vmatpush1.msra.mxu0 %v325
    %757 = vmatprep.subr.mxu0 %v329
    %758 = vmatpush1.msra.mxu0 %v328
    %759 = vmatprep.mubr.f32.mxu0 %v590
    %760 = vmatmul.mubr.f32.gmra.mrb[0].mxu0 %v588
    %v761 = vpop.f32.mrb[0].mxu0
    %v762 = vadd.f32 %v691, %v761
    %v763 = vpop.f32.mrb[0].mxu0
    %v764 = vadd.f32 %v693, %v763
    %765 = vdwg.mxu0
    %766 = vmatprep.subr.mxu0 %v332
    %767 = vmatpush1.msra.mxu0 %v331
    %768 = vmatprep.subr.mxu0 %v335
    %769 = vmatpush1.msra.mxu0 %v334
    %770 = vmatprep.subr.mxu0 %v338
    %771 = vmatpush1.msra.mxu0 %v337
    %772 = vmatprep.subr.mxu0 %v341
    %773 = vmatpush1.msra.mxu0 %v340
    %774 = vmatprep.subr.mxu0 %v344
    %775 = vmatpush1.msra.mxu0 %v343
    %776 = vmatprep.subr.mxu0 %v347
    %777 = vmatpush1.msra.mxu0 %v346
    %778 = vmatprep.subr.mxu0 %v350
    %779 = vmatpush1.msra.mxu0 %v349
    %780 = vmatprep.subr.mxu0 %v353
    %781 = vmatpush1.msra.mxu0 %v352
    %782 = vmatprep.subr.mxu0 %v356
    %783 = vmatpush1.msra.mxu0 %v355
    %784 = vmatprep.subr.mxu0 %v359
    %785 = vmatpush1.msra.mxu0 %v358
    %786 = vmatprep.subr.mxu0 %v362
    %787 = vmatpush1.msra.mxu0 %v361
    %788 = vmatprep.subr.mxu0 %v365
    %789 = vmatpush1.msra.mxu0 %v364
    %790 = vmatprep.subr.mxu0 %v368
    %791 = vmatpush1.msra.mxu0 %v367
    %792 = vmatprep.subr.mxu0 %v371
    %793 = vmatpush1.msra.mxu0 %v370
    %794 = vmatprep.subr.mxu0 %v374
    %795 = vmatpush1.msra.mxu0 %v373
    %796 = vmatprep.subr.mxu0 %v377
    %797 = vmatpush1.msra.mxu0 %v376
    %798 = vmatprep.subr.mxu0 %v380
    %799 = vmatpush1.msra.mxu0 %v379
    %800 = vmatprep.subr.mxu0 %v383
    %801 = vmatpush1.msra.mxu0 %v382
    %802 = vmatprep.subr.mxu0 %v386
    %803 = vmatpush1.msra.mxu0 %v385
    %804 = vmatprep.subr.mxu0 %v389
    %805 = vmatpush1.msra.mxu0 %v388
    %806 = vmatprep.subr.mxu0 %v392
    %807 = vmatpush1.msra.mxu0 %v391
    %808 = vmatprep.subr.mxu0 %v395
    %809 = vmatpush1.msra.mxu0 %v394
    %810 = vmatprep.subr.mxu0 %v398
    %811 = vmatpush1.msra.mxu0 %v397
    %812 = vmatprep.subr.mxu0 %v401
    %813 = vmatpush1.msra.mxu0 %v400
    %814 = vmatprep.subr.mxu0 %v404
    %815 = vmatpush1.msra.mxu0 %v403
    %816 = vmatprep.subr.mxu0 %v407
    %817 = vmatpush1.msra.mxu0 %v406
    %818 = vmatprep.subr.mxu0 %v410
    %819 = vmatpush1.msra.mxu0 %v409
    %820 = vmatprep.subr.mxu0 %v413
    %821 = vmatpush1.msra.mxu0 %v412
    %822 = vmatprep.subr.mxu0 %v416
    %823 = vmatpush1.msra.mxu0 %v415
    %824 = vmatprep.subr.mxu0 %v419
    %825 = vmatpush1.msra.mxu0 %v418
    %826 = vmatprep.subr.mxu0 %v422
    %827 = vmatpush1.msra.mxu0 %v421
    %828 = vmatprep.subr.mxu0 %v425
    %829 = vmatpush1.msra.mxu0 %v424
    %830 = vmatprep.mubr.f32.mxu0 %v606
    %831 = vmatmul.mubr.f32.gmra.mrb[0].mxu0 %v598
    %v832 = vpop.f32.mrb[0].mxu0
    %v833 = vadd.f32 %v762, %v832
    %v834 = vpop.f32.mrb[0].mxu0
    %v835 = vadd.f32 %v764, %v834
    %836 = vdwg.mxu0
    %837 = vmatprep.subr.mxu0 %v428
    %838 = vmatpush1.msra.mxu0 %v427
    %839 = vmatprep.subr.mxu0 %v431
    %840 = vmatpush1.msra.mxu0 %v430
    %841 = vmatprep.subr.mxu0 %v434
    %842 = vmatpush1.msra.mxu0 %v433
    %843 = vmatprep.subr.mxu0 %v437
    %844 = vmatpush1.msra.mxu0 %v436
    %845 = vmatprep.subr.mxu0 %v440
    %846 = vmatpush1.msra.mxu0 %v439
    %847 = vmatprep.subr.mxu0 %v443
    %848 = vmatpush1.msra.mxu0 %v442
    %849 = vmatprep.subr.mxu0 %v446
    %850 = vmatpush1.msra.mxu0 %v445
    %851 = vmatprep.subr.mxu0 %v449
    %852 = vmatpush1.msra.mxu0 %v448
    %853 = vmatprep.subr.mxu0 %v452
    %854 = vmatpush1.msra.mxu0 %v451
    %855 = vmatprep.subr.mxu0 %v455
    %856 = vmatpush1.msra.mxu0 %v454
    %857 = vmatprep.subr.mxu0 %v458
    %858 = vmatpush1.msra.mxu0 %v457
    %859 = vmatprep.subr.mxu0 %v461
    %860 = vmatpush1.msra.mxu0 %v460
    %861 = vmatprep.subr.mxu0 %v464
    %862 = vmatpush1.msra.mxu0 %v463
    %863 = vmatprep.subr.mxu0 %v467
    %864 = vmatpush1.msra.mxu0 %v466
    %865 = vmatprep.subr.mxu0 %v470
    %866 = vmatpush1.msra.mxu0 %v469
    %867 = vmatprep.subr.mxu0 %v473
    %868 = vmatpush1.msra.mxu0 %v472
    %869 = vmatprep.subr.mxu0 %v476
    %870 = vmatpush1.msra.mxu0 %v475
    %871 = vmatprep.subr.mxu0 %v479
    %872 = vmatpush1.msra.mxu0 %v478
    %873 = vmatprep.subr.mxu0 %v482
    %874 = vmatpush1.msra.mxu0 %v481
    %875 = vmatprep.subr.mxu0 %v485
    %876 = vmatpush1.msra.mxu0 %v484
    %877 = vmatprep.subr.mxu0 %v488
    %878 = vmatpush1.msra.mxu0 %v487
    %879 = vmatprep.subr.mxu0 %v491
    %880 = vmatpush1.msra.mxu0 %v490
    %881 = vmatprep.subr.mxu0 %v494
    %882 = vmatpush1.msra.mxu0 %v493
    %883 = vmatprep.subr.mxu0 %v497
    %884 = vmatpush1.msra.mxu0 %v496
    %885 = vmatprep.subr.mxu0 %v500
    %886 = vmatpush1.msra.mxu0 %v499
    %887 = vmatprep.subr.mxu0 %v503
    %888 = vmatpush1.msra.mxu0 %v502
    %889 = vmatprep.subr.mxu0 %v506
    %890 = vmatpush1.msra.mxu0 %v505
    %891 = vmatprep.subr.mxu0 %v509
    %892 = vmatpush1.msra.mxu0 %v508
    %893 = vmatprep.subr.mxu0 %v512
    %894 = vmatpush1.msra.mxu0 %v511
    %895 = vmatprep.subr.mxu0 %v515
    %896 = vmatpush1.msra.mxu0 %v514
    %897 = vmatprep.subr.mxu0 %v518
    %898 = vmatpush1.msra.mxu0 %v517
    %899 = vmatprep.subr.mxu0 %v521
    %900 = vmatpush1.msra.mxu0 %v520
    %901 = vmatprep.mubr.f32.mxu0 %v607
    %902 = vmatmul.mubr.f32.gmra.mrb[0].mxu0 %v605
    %v903 = vpop.f32.mrb[0].mxu0
    %v904 = vadd.f32 %v833, %v903
    %v905 = vpop.f32.mrb[0].mxu0
    %v906 = vadd.f32 %v835, %v905
    %907 = vdwg.mxu0
    %908 = vmatprep.subr.mxu0 %v524
    %909 = vmatpush1.msra.mxu0 %v523
    %910 = vmatprep.subr.mxu0 %v527
    %911 = vmatpush1.msra.mxu0 %v526
    %912 = vmatprep.subr.mxu0 %v530
    %913 = vmatpush1.msra.mxu0 %v529
    %914 = vmatprep.subr.mxu0 %v533
    %915 = vmatpush1.msra.mxu0 %v532
    %916 = vmatprep.subr.mxu0 %v536
    %917 = vmatpush1.msra.mxu0 %v535
    %918 = vmatprep.subr.mxu0 %v539
    %919 = vmatpush1.msra.mxu0 %v538
    %920 = vmatprep.subr.mxu0 %v542
    %921 = vmatpush1.msra.mxu0 %v541
    %922 = vmatprep.subr.mxu0 %v545
    %923 = vmatpush1.msra.mxu0 %v544
    %924 = vmatprep.subr.mxu0 %v548
    %925 = vmatpush1.msra.mxu0 %v547
    %926 = vmatprep.subr.mxu0 %v551
    %927 = vmatpush1.msra.mxu0 %v550
    %928 = vmatprep.subr.mxu0 %v554
    %929 = vmatpush1.msra.mxu0 %v553
    %930 = vmatprep.subr.mxu0 %v557
    %931 = vmatpush1.msra.mxu0 %v556
    %932 = vmatprep.subr.mxu0 %v560
    %933 = vmatpush1.msra.mxu0 %v559
    %934 = vmatprep.subr.mxu0 %v563
    %935 = vmatpush1.msra.mxu0 %v562
    %936 = vmatprep.subr.mxu0 %v566
    %937 = vmatpush1.msra.mxu0 %v565
    %938 = vmatprep.subr.mxu0 %v569
    %939 = vmatpush1.msra.mxu0 %v568
    %940 = vmatprep.subr.mxu0 0.0
    %941 = vmatpush1.msra.mxu0 0.0
    %942 = vmatprep.subr.mxu0 0.0
    %943 = vmatpush1.msra.mxu0 0.0
    %944 = vmatprep.subr.mxu0 0.0
    %945 = vmatpush1.msra.mxu0 0.0
    %946 = vmatprep.subr.mxu0 0.0
    %947 = vmatpush1.msra.mxu0 0.0
    %948 = vmatprep.subr.mxu0 0.0
    %949 = vmatpush1.msra.mxu0 0.0
    %950 = vmatprep.subr.mxu0 0.0
    %951 = vmatpush1.msra.mxu0 0.0
    %952 = vmatprep.subr.mxu0 0.0
    %953 = vmatpush1.msra.mxu0 0.0
    %954 = vmatprep.subr.mxu0 0.0
    %955 = vmatpush1.msra.mxu0 0.0
    %956 = vmatprep.subr.mxu0 0.0
    %957 = vmatpush1.msra.mxu0 0.0
    %958 = vmatprep.subr.mxu0 0.0
    %959 = vmatpush1.msra.mxu0 0.0
    %960 = vmatprep.subr.mxu0 0.0
    %961 = vmatpush1.msra.mxu0 0.0
    %962 = vmatprep.subr.mxu0 0.0
    %963 = vmatpush1.msra.mxu0 0.0
    %964 = vmatprep.subr.mxu0 0.0
    %965 = vmatpush1.msra.mxu0 0.0
    %966 = vmatprep.subr.mxu0 0.0
    %967 = vmatpush1.msra.mxu0 0.0
    %968 = vmatprep.subr.mxu0 0.0
    %969 = vmatpush1.msra.mxu0 0.0
    %970 = vmatprep.subr.mxu0 0.0
    %971 = vmatpush1.msra.mxu0 0.0
    %972 = vmatprep.mubr.f32.mxu0 0.0
    %973 = vmatmul.mubr.f32.gmra.mrb[0].mxu0 %v614
    %v974 = vpop.f32.mrb[0].mxu0
    %v975 = vadd.f32 %v904, %v974
    %v976 = vpop.f32.mrb[0].mxu0
    %v977 = vadd.f32 %v906, %v976
    %978 = vdwg.mxu0
    %979 = vmatprep.subr.mxu0 0.0
    %980 = vmatpush1.msra.mxu0 %v141
    %981 = vmatprep.subr.mxu0 0.0
    %982 = vmatpush1.msra.mxu0 %v144
    %983 = vmatprep.subr.mxu0 0.0
    %984 = vmatpush1.msra.mxu0 %v147
    %985 = vmatprep.subr.mxu0 0.0
    %986 = vmatpush1.msra.mxu0 %v150
    %987 = vmatprep.subr.mxu0 0.0
    %988 = vmatpush1.msra.mxu0 %v153
    %989 = vmatprep.subr.mxu0 0.0
    %990 = vmatpush1.msra.mxu0 %v156
    %991 = vmatprep.subr.mxu0 0.0
    %992 = vmatpush1.msra.mxu0 %v159
    %993 = vmatprep.subr.mxu0 0.0
    %994 = vmatpush1.msra.mxu0 %v162
    %995 = vmatprep.subr.mxu0 0.0
    %996 = vmatpush1.msra.mxu0 %v165
    %997 = vmatprep.subr.mxu0 0.0
    %998 = vmatpush1.msra.mxu0 %v168
    %999 = vmatprep.subr.mxu0 0.0
    %1000 = vmatpush1.msra.mxu0 %v171
    %1001 = vmatprep.subr.mxu0 0.0
    %1002 = vmatpush1.msra.mxu0 %v174
    %1003 = vmatprep.subr.mxu0 0.0
    %1004 = vmatpush1.msra.mxu0 %v177
    %1005 = vmatprep.subr.mxu0 0.0
    %1006 = vmatpush1.msra.mxu0 %v180
    %1007 = vmatprep.subr.mxu0 0.0
    %1008 = vmatpush1.msra.mxu0 %v183
    %1009 = vmatprep.subr.mxu0 0.0
    %1010 = vmatpush1.msra.mxu0 %v186
    %1011 = vmatprep.subr.mxu0 0.0
    %1012 = vmatpush1.msra.mxu0 %v189
    %1013 = vmatprep.subr.mxu0 0.0
    %1014 = vmatpush1.msra.mxu0 %v192
    %1015 = vmatprep.subr.mxu0 0.0
    %1016 = vmatpush1.msra.mxu0 %v195
    %1017 = vmatprep.subr.mxu0 0.0
    %1018 = vmatpush1.msra.mxu0 %v198
    %1019 = vmatprep.subr.mxu0 0.0
    %1020 = vmatpush1.msra.mxu0 %v201
    %1021 = vmatprep.subr.mxu0 0.0
    %1022 = vmatpush1.msra.mxu0 %v204
    %1023 = vmatprep.subr.mxu0 0.0
    %1024 = vmatpush1.msra.mxu0 %v207
    %1025 = vmatprep.subr.mxu0 0.0
    %1026 = vmatpush1.msra.mxu0 %v210
    %1027 = vmatprep.subr.mxu0 0.0
    %1028 = vmatpush1.msra.mxu0 %v213
    %1029 = vmatprep.subr.mxu0 0.0
    %1030 = vmatpush1.msra.mxu0 %v216
    %1031 = vmatprep.subr.mxu0 0.0
    %1032 = vmatpush1.msra.mxu0 %v219
    %1033 = vmatprep.subr.mxu0 0.0
    %1034 = vmatpush1.msra.mxu0 %v222
    %1035 = vmatprep.subr.mxu0 0.0
    %1036 = vmatpush1.msra.mxu0 %v225
    %1037 = vmatprep.subr.mxu0 0.0
    %1038 = vmatpush1.msra.mxu0 %v228
    %1039 = vmatprep.subr.mxu0 0.0
    %1040 = vmatpush1.msra.mxu0 %v231
    %1041 = vmatprep.subr.mxu0 0.0
    %1042 = vmatpush1.msra.mxu0 %v234
    %1043 = vmatprep.mubr.f32.mxu0 %v589
    %1044 = vmatmul.mubr.f32.gmra.mrb[0].mxu0 %v581
    %v1045 = vpop.f32.mrb[0].mxu0
    %v1046 = vadd.f32 0.0, %v1045
    %v1047 = vpop.f32.mrb[0].mxu0
    %1048 = vdwg.mxu0
    %1049 = vmatprep.subr.mxu0 0.0
    %1050 = vmatpush1.msra.mxu0 %v237
    %1051 = vmatprep.subr.mxu0 0.0
    %1052 = vmatpush1.msra.mxu0 %v240
    %1053 = vmatprep.subr.mxu0 0.0
    %1054 = vmatpush1.msra.mxu0 %v243
    %1055 = vmatprep.subr.mxu0 0.0
    %1056 = vmatpush1.msra.mxu0 %v246
    %1057 = vmatprep.subr.mxu0 0.0
    %1058 = vmatpush1.msra.mxu0 %v249
    %1059 = vmatprep.subr.mxu0 0.0
    %1060 = vmatpush1.msra.mxu0 %v252
    %1061 = vmatprep.subr.mxu0 0.0
    %1062 = vmatpush1.msra.mxu0 %v255
    %1063 = vmatprep.subr.mxu0 0.0
    %1064 = vmatpush1.msra.mxu0 %v258
    %1065 = vmatprep.subr.mxu0 0.0
    %1066 = vmatpush1.msra.mxu0 %v261
    %1067 = vmatprep.subr.mxu0 0.0
    %1068 = vmatpush1.msra.mxu0 %v264
    %1069 = vmatprep.subr.mxu0 0.0
    %1070 = vmatpush1.msra.mxu0 %v267
    %1071 = vmatprep.subr.mxu0 0.0
    %1072 = vmatpush1.msra.mxu0 %v270
    %1073 = vmatprep.subr.mxu0 0.0
    %1074 = vmatpush1.msra.mxu0 %v273
    %1075 = vmatprep.subr.mxu0 0.0
    %1076 = vmatpush1.msra.mxu0 %v276
    %1077 = vmatprep.subr.mxu0 0.0
    %1078 = vmatpush1.msra.mxu0 %v279
    %1079 = vmatprep.subr.mxu0 0.0
    %1080 = vmatpush1.msra.mxu0 %v282
    %1081 = vmatprep.subr.mxu0 0.0
    %1082 = vmatpush1.msra.mxu0 %v285
    %1083 = vmatprep.subr.mxu0 0.0
    %1084 = vmatpush1.msra.mxu0 %v288
    %1085 = vmatprep.subr.mxu0 0.0
    %1086 = vmatpush1.msra.mxu0 %v291
    %1087 = vmatprep.subr.mxu0 0.0
    %1088 = vmatpush1.msra.mxu0 %v294
    %1089 = vmatprep.subr.mxu0 0.0
    %1090 = vmatpush1.msra.mxu0 %v297
    %1091 = vmatprep.subr.mxu0 0.0
    %1092 = vmatpush1.msra.mxu0 %v300
    %1093 = vmatprep.subr.mxu0 0.0
    %1094 = vmatpush1.msra.mxu0 %v303
    %1095 = vmatprep.subr.mxu0 0.0
    %1096 = vmatpush1.msra.mxu0 %v306
    %1097 = vmatprep.subr.mxu0 0.0
    %1098 = vmatpush1.msra.mxu0 %v309
    %1099 = vmatprep.subr.mxu0 0.0
    %1100 = vmatpush1.msra.mxu0 %v312
    %1101 = vmatprep.subr.mxu0 0.0
    %1102 = vmatpush1.msra.mxu0 %v315
    %1103 = vmatprep.subr.mxu0 0.0
    %1104 = vmatpush1.msra.mxu0 %v318
    %1105 = vmatprep.subr.mxu0 0.0
    %1106 = vmatpush1.msra.mxu0 %v321
    %1107 = vmatprep.subr.mxu0 0.0
    %1108 = vmatpush1.msra.mxu0 %v324
    %1109 = vmatprep.subr.mxu0 0.0
    %1110 = vmatpush1.msra.mxu0 %v327
    %1111 = vmatprep.subr.mxu0 0.0
    %1112 = vmatpush1.msra.mxu0 %v330
    %1113 = vmatprep.mubr.f32.mxu0 %v590
    %1114 = vmatmul.mubr.f32.gmra.mrb[0].mxu0 %v588
    %v1115 = vpop.f32.mrb[0].mxu0
    %v1116 = vadd.f32 %v1046, %v1115
    %v1117 = vpop.f32.mrb[0].mxu0
    %1118 = vdwg.mxu0
    %1119 = vmatprep.subr.mxu0 0.0
    %1120 = vmatpush1.msra.mxu0 %v333
    %1121 = vmatprep.subr.mxu0 0.0
    %1122 = vmatpush1.msra.mxu0 %v336
    %1123 = vmatprep.subr.mxu0 0.0
    %1124 = vmatpush1.msra.mxu0 %v339
    %1125 = vmatprep.subr.mxu0 0.0
    %1126 = vmatpush1.msra.mxu0 %v342
    %1127 = vmatprep.subr.mxu0 0.0
    %1128 = vmatpush1.msra.mxu0 %v345
    %1129 = vmatprep.subr.mxu0 0.0
    %1130 = vmatpush1.msra.mxu0 %v348
    %1131 = vmatprep.subr.mxu0 0.0
    %1132 = vmatpush1.msra.mxu0 %v351
    %1133 = vmatprep.subr.mxu0 0.0
    %1134 = vmatpush1.msra.mxu0 %v354
    %1135 = vmatprep.subr.mxu0 0.0
    %1136 = vmatpush1.msra.mxu0 %v357
    %1137 = vmatprep.subr.mxu0 0.0
    %1138 = vmatpush1.msra.mxu0 %v360
    %1139 = vmatprep.subr.mxu0 0.0
    %1140 = vmatpush1.msra.mxu0 %v363
    %1141 = vmatprep.subr.mxu0 0.0
    %1142 = vmatpush1.msra.mxu0 %v366
    %1143 = vmatprep.subr.mxu0 0.0
    %1144 = vmatpush1.msra.mxu0 %v369
    %1145 = vmatprep.subr.mxu0 0.0
    %1146 = vmatpush1.msra.mxu0 %v372
    %1147 = vmatprep.subr.mxu0 0.0
    %1148 = vmatpush1.msra.mxu0 %v375
    %1149 = vmatprep.subr.mxu0 0.0
    %1150 = vmatpush1.msra.mxu0 %v378
    %1151 = vmatprep.subr.mxu0 0.0
    %1152 = vmatpush1.msra.mxu0 %v381
    %1153 = vmatprep.subr.mxu0 0.0
    %1154 = vmatpush1.msra.mxu0 %v384
    %1155 = vmatprep.subr.mxu0 0.0
    %1156 = vmatpush1.msra.mxu0 %v387
    %1157 = vmatprep.subr.mxu0 0.0
    %1158 = vmatpush1.msra.mxu0 %v390
    %1159 = vmatprep.subr.mxu0 0.0
    %1160 = vmatpush1.msra.mxu0 %v393
    %1161 = vmatprep.subr.mxu0 0.0
    %1162 = vmatpush1.msra.mxu0 %v396
    %1163 = vmatprep.subr.mxu0 0.0
    %1164 = vmatpush1.msra.mxu0 %v399
    %1165 = vmatprep.subr.mxu0 0.0
    %1166 = vmatpush1.msra.mxu0 %v402
    %1167 = vmatprep.subr.mxu0 0.0
    %1168 = vmatpush1.msra.mxu0 %v405
    %1169 = vmatprep.subr.mxu0 0.0
    %1170 = vmatpush1.msra.mxu0 %v408
    %1171 = vmatprep.subr.mxu0 0.0
    %1172 = vmatpush1.msra.mxu0 %v411
    %1173 = vmatprep.subr.mxu0 0.0
    %1174 = vmatpush1.msra.mxu0 %v414
    %1175 = vmatprep.subr.mxu0 0.0
    %1176 = vmatpush1.msra.mxu0 %v417
    %1177 = vmatprep.subr.mxu0 0.0
    %1178 = vmatpush1.msra.mxu0 %v420
    %1179 = vmatprep.subr.mxu0 0.0
    %1180 = vmatpush1.msra.mxu0 %v423
    %1181 = vmatprep.subr.mxu0 0.0
    %1182 = vmatpush1.msra.mxu0 %v426
    %1183 = vmatprep.mubr.f32.mxu0 %v606
    %1184 = vmatmul.mubr.f32.gmra.mrb[0].mxu0 %v598
    %v1185 = vpop.f32.mrb[0].mxu0
    %v1186 = vadd.f32 %v1116, %v1185
    %v1187 = vpop.f32.mrb[0].mxu0
    %1188 = vdwg.mxu0
    %1189 = vmatprep.subr.mxu0 0.0
    %1190 = vmatpush1.msra.mxu0 %v429
    %1191 = vmatprep.subr.mxu0 0.0
    %1192 = vmatpush1.msra.mxu0 %v432
    %1193 = vmatprep.subr.mxu0 0.0
    %1194 = vmatpush1.msra.mxu0 %v435
    %1195 = vmatprep.subr.mxu0 0.0
    %1196 = vmatpush1.msra.mxu0 %v438
    %1197 = vmatprep.subr.mxu0 0.0
    %1198 = vmatpush1.msra.mxu0 %v441
    %1199 = vmatprep.subr.mxu0 0.0
    %1200 = vmatpush1.msra.mxu0 %v444
    %1201 = vmatprep.subr.mxu0 0.0
    %1202 = vmatpush1.msra.mxu0 %v447
    %1203 = vmatprep.subr.mxu0 0.0
    %1204 = vmatpush1.msra.mxu0 %v450
    %1205 = vmatprep.subr.mxu0 0.0
    %1206 = vmatpush1.msra.mxu0 %v453
    %1207 = vmatprep.subr.mxu0 0.0
    %1208 = vmatpush1.msra.mxu0 %v456
    %1209 = vmatprep.subr.mxu0 0.0
    %1210 = vmatpush1.msra.mxu0 %v459
    %1211 = vmatprep.subr.mxu0 0.0
    %1212 = vmatpush1.msra.mxu0 %v462
    %1213 = vmatprep.subr.mxu0 0.0
    %1214 = vmatpush1.msra.mxu0 %v465
    %1215 = vmatprep.subr.mxu0 0.0
    %1216 = vmatpush1.msra.mxu0 %v468
    %1217 = vmatprep.subr.mxu0 0.0
    %1218 = vmatpush1.msra.mxu0 %v471
    %1219 = vmatprep.subr.mxu0 0.0
    %1220 = vmatpush1.msra.mxu0 %v474
    %1221 = vmatprep.subr.mxu0 0.0
    %1222 = vmatpush1.msra.mxu0 %v477
    %1223 = vmatprep.subr.mxu0 0.0
    %1224 = vmatpush1.msra.mxu0 %v480
    %1225 = vmatprep.subr.mxu0 0.0
    %1226 = vmatpush1.msra.mxu0 %v483
    %1227 = vmatprep.subr.mxu0 0.0
    %1228 = vmatpush1.msra.mxu0 %v486
    %1229 = vmatprep.subr.mxu0 0.0
    %1230 = vmatpush1.msra.mxu0 %v489
    %1231 = vmatprep.subr.mxu0 0.0
    %1232 = vmatpush1.msra.mxu0 %v492
    %1233 = vmatprep.subr.mxu0 0.0
    %1234 = vmatpush1.msra.mxu0 %v495
    %1235 = vmatprep.subr.mxu0 0.0
    %1236 = vmatpush1.msra.mxu0 %v498
    %1237 = vmatprep.subr.mxu0 0.0
    %1238 = vmatpush1.msra.mxu0 %v501
    %1239 = vmatprep.subr.mxu0 0.0
    %1240 = vmatpush1.msra.mxu0 %v504
    %1241 = vmatprep.subr.mxu0 0.0
    %1242 = vmatpush1.msra.mxu0 %v507
    %1243 = vmatprep.subr.mxu0 0.0
    %1244 = vmatpush1.msra.mxu0 %v510
    %1245 = vmatprep.subr.mxu0 0.0
    %1246 = vmatpush1.msra.mxu0 %v513
    %1247 = vmatprep.subr.mxu0 0.0
    %1248 = vmatpush1.msra.mxu0 %v516
    %1249 = vmatprep.subr.mxu0 0.0
    %1250 = vmatpush1.msra.mxu0 %v519
    %1251 = vmatprep.subr.mxu0 0.0
    %1252 = vmatpush1.msra.mxu0 %v522
    %1253 = vmatprep.mubr.f32.mxu0 %v607
    %1254 = vmatmul.mubr.f32.gmra.mrb[0].mxu0 %v605
    %v1255 = vpop.f32.mrb[0].mxu0
    %v1256 = vadd.f32 %v1186, %v1255
    %v1257 = vpop.f32.mrb[0].mxu0
    %1258 = vdwg.mxu0
    %1259 = vmatprep.subr.mxu0 0.0
    %1260 = vmatpush1.msra.mxu0 %v525
    %1261 = vmatprep.subr.mxu0 0.0
    %1262 = vmatpush1.msra.mxu0 %v528
    %1263 = vmatprep.subr.mxu0 0.0
    %1264 = vmatpush1.msra.mxu0 %v531
    %1265 = vmatprep.subr.mxu0 0.0
    %1266 = vmatpush1.msra.mxu0 %v534
    %1267 = vmatprep.subr.mxu0 0.0
    %1268 = vmatpush1.msra.mxu0 %v537
    %1269 = vmatprep.subr.mxu0 0.0
    %1270 = vmatpush1.msra.mxu0 %v540
    %1271 = vmatprep.subr.mxu0 0.0
    %1272 = vmatpush1.msra.mxu0 %v543
    %1273 = vmatprep.subr.mxu0 0.0
    %1274 = vmatpush1.msra.mxu0 %v546
    %1275 = vmatprep.subr.mxu0 0.0
    %1276 = vmatpush1.msra.mxu0 %v549
    %1277 = vmatprep.subr.mxu0 0.0
    %1278 = vmatpush1.msra.mxu0 %v552
    %1279 = vmatprep.subr.mxu0 0.0
    %1280 = vmatpush1.msra.mxu0 %v555
    %1281 = vmatprep.subr.mxu0 0.0
    %1282 = vmatpush1.msra.mxu0 %v558
    %1283 = vmatprep.subr.mxu0 0.0
    %1284 = vmatpush1.msra.mxu0 %v561
    %1285 = vmatprep.subr.mxu0 0.0
    %1286 = vmatpush1.msra.mxu0 %v564
    %1287 = vmatprep.subr.mxu0 0.0
    %1288 = vmatpush1.msra.mxu0 %v567
    %1289 = vmatprep.subr.mxu0 0.0
    %1290 = vmatpush1.msra.mxu0 %v570
    %1291 = vmatprep.subr.mxu0 0.0
    %1292 = vmatpush1.msra.mxu0 0.0
    %1293 = vmatprep.subr.mxu0 0.0
    %1294 = vmatpush1.msra.mxu0 0.0
    %1295 = vmatprep.subr.mxu0 0.0
    %1296 = vmatpush1.msra.mxu0 0.0
    %1297 = vmatprep.subr.mxu0 0.0
    %1298 = vmatpush1.msra.mxu0 0.0
    %1299 = vmatprep.subr.mxu0 0.0
    %1300 = vmatpush1.msra.mxu0 0.0
    %1301 = vmatprep.subr.mxu0 0.0
    %1302 = vmatpush1.msra.mxu0 0.0
    %1303 = vmatprep.subr.mxu0 0.0
    %1304 = vmatpush1.msra.mxu0 0.0
    %1305 = vmatprep.subr.mxu0 0.0
    %1306 = vmatpush1.msra.mxu0 0.0
    %1307 = vmatprep.subr.mxu0 0.0
    %1308 = vmatpush1.msra.mxu0 0.0
    %1309 = vmatprep.subr.mxu0 0.0
    %1310 = vmatpush1.msra.mxu0 0.0
    %1311 = vmatprep.subr.mxu0 0.0
    %1312 = vmatpush1.msra.mxu0 0.0
    %1313 = vmatprep.subr.mxu0 0.0
    %1314 = vmatpush1.msra.mxu0 0.0
    %1315 = vmatprep.subr.mxu0 0.0
    %1316 = vmatpush1.msra.mxu0 0.0
    %1317 = vmatprep.subr.mxu0 0.0
    %1318 = vmatpush1.msra.mxu0 0.0
    %1319 = vmatprep.subr.mxu0 0.0
    %1320 = vmatpush1.msra.mxu0 0.0
    %1321 = vmatprep.subr.mxu0 0.0
    %1322 = vmatpush1.msra.mxu0 0.0
    %1323 = vmatprep.mubr.f32.mxu0 0.0
    %1324 = vmatmul.mubr.f32.gmra.mrb[0].mxu0 %v614
    %v1325 = vpop.f32.mrb[0].mxu0
    %v1326 = vadd.f32 %v1256, %v1325
    %v1327 = vpop.f32.mrb[0].mxu0
    %1328 = vdwg.mxu0
    %v1332 = vcombine.low %v975, %v977
    %v1334 = vunpack.c.l.s4 1983009808
    %v1335 = vunpack.c.0.s8 %v1334
    %v1336 = vlaneseq
    %v1337 = vshrl.u32 %v1336, 7
    %v1338 = vsub.s32 %v1335, %v1337
    %v1339 = vrot.slane %v1332, %v1338
    %v1341 = vunpack.c.l.s4 1983009808
    %v1342 = vunpack.c.0.s8 %v1341
    %v1343 = vlaneseq
    %v1344 = vshrl.u32 %v1343, 7
    %v1345 = vsub.s32 %v1342, %v1344
    %v1346 = vrot.slane %v1326, %v1345
    %v1347 = vcombine.low %v1339, %v1346
    %1349 = vst [vmem:[%s4] sm:$0x3f] %v1347
    // Predicated region
    $region26: #{inner_product.1} parent=1 // pred_check
      _
    $region27: #{inner_product.1} parent=1 // pred_check_branch
      %1351 = sbr.rel (0) target = $region29
    $region28: #{inner_product.1} parent=1 // pred_region
      _
    $region29: #{inner_product.1} parent=1 // pred_fallthru
      _
    // Predicated region
    $region30: #{inner_product.1} parent=1 // pred_check
      _
    $region31: #{inner_product.1} parent=1 // pred_check_branch
      %1353 = sbr.rel (0) target = $region33
    $region32: #{inner_product.1} parent=1 // pred_region
      _
    $region33: #{inner_product.1} parent=1 // pred_fallthru
      _
    %1354 = vsyncpa [#allocation3], 1
    %1355 = vsyncpa [#allocation5], 1

</llo_original>
